<compile_context>
chip_gen: v7x
topology: tpu7x:2x2x1
jax: 0.10.0
libtpu: 0.0.40
codegen_flags: <defaults>
</compile_context>

<pallas_src>
import jax
import jax.numpy as jnp
from jax.experimental import pallas as pl
from jax.experimental.pallas import tpu as pltpu

EPS = 1e-5


def _round_up(n, m=128):
    return ((n + m - 1) // m) * m


def _batchnorm(h, gamma, beta):
    """Training-mode BatchNorm1d, fused one-pass statistics (f32)."""
    inv_b = 1.0 / h.shape[0]
    s1 = jnp.sum(h, axis=0, keepdims=True)
    s2 = jnp.sum(h * h, axis=0, keepdims=True)
    mean = s1 * inv_b
    var = jnp.maximum(s2 * inv_b - mean * mean, 0.0)  # guard fp cancellation
    scale = gamma * jax.lax.rsqrt(var + EPS)
    shift = beta - mean * scale
    return h * scale + shift


def critic_kernel(
    xu_ref,
    g0_ref, b0_ref,
    w1_ref, c1_ref,
    w2_ref, c2_ref,
    g2_ref, b2_ref,
    w3_ref, c3_ref,
    w4_ref, c4_ref,
    g4_ref, b4_ref,
    w5_ref, c5_ref,
    out_ref,
):
    x = xu_ref[...]  # f32, (B, IN_P)

    # bn_0
    x = _batchnorm(x, g0_ref[...], b0_ref[...])

    # l1 + relu  (bf16 operands, f32 accumulation)
    h = jnp.dot(x.astype(jnp.bfloat16), w1_ref[...],
                preferred_element_type=jnp.float32) + c1_ref[...]
    h = jnp.maximum(h, 0.0)

    # l2
    h = jnp.dot(h.astype(jnp.bfloat16), w2_ref[...],
                preferred_element_type=jnp.float32) + c2_ref[...]

    # bn_2 + relu
    h = _batchnorm(h, g2_ref[...], b2_ref[...])
    h = jnp.maximum(h, 0.0)

    # l3 + relu
    h = jnp.dot(h.astype(jnp.bfloat16), w3_ref[...],
                preferred_element_type=jnp.float32) + c3_ref[...]
    h = jnp.maximum(h, 0.0)

    # l4
    h = jnp.dot(h.astype(jnp.bfloat16), w4_ref[...],
                preferred_element_type=jnp.float32) + c4_ref[...]

    # bn_4 + relu
    h = _batchnorm(h, g4_ref[...], b4_ref[...])
    h = jnp.maximum(h, 0.0)

    # l5: 1-wide output -> VPU multiply + lane reduction (skip the MXU).
    y = jnp.sum(h * w5_ref[...], axis=1, keepdims=True)          # (B, 1) f32
    out_ref[...] = (jnp.broadcast_to(y, out_ref.shape) + c5_ref[...]
                    ).astype(out_ref.dtype)                       # lane-dense store


def init_critic_params(state_dim, action_dim, key):
    """Parameters matching the PyTorch module, pre-padded to 128-lane multiples.

    Linear weights are stored transposed as (in_pad, out_pad) bf16 (zero in the
    padded region) so the kernel computes x @ W. Biases / BN affine params are
    f32 (1, D_pad) rows with zeros in the padded region (padded beta/bias must
    be zero so padded columns stay identically zero through the network).
    w5 is a (1, 128) f32 row used by the VPU reduction; c5 is its scalar bias
    broadcast across a (1, 128) row.
    """
    in0 = state_dim + action_dim
    in0_p = _round_up(in0)
    real = [(in0, 400), (400, 300), (300, 300), (300, 50)]
    padded = [(in0_p, 512), (512, 384), (384, 384), (384, 128)]
    keys = jax.random.split(key, 10)

    def linear(idx, fan_in, fan_out, pad_in, pad_out):
        bound = 1.0 / (fan_in ** 0.5)
        w = jax.random.uniform(keys[2 * idx], (fan_in, fan_out), jnp.float32,
                               -bound, bound)
        b = jax.random.uniform(keys[2 * idx + 1], (1, fan_out), jnp.float32,
                               -bound, bound)
        w = jnp.pad(w, ((0, pad_in - fan_in), (0, pad_out - fan_out)))
        b = jnp.pad(b, ((0, 0), (0, pad_out - fan_out)))
        return w.astype(jnp.bfloat16), b

    def bn(d, d_pad):
        gamma = jnp.pad(jnp.ones((1, d), jnp.float32), ((0, 0), (0, d_pad - d)))
        beta = jnp.zeros((1, d_pad), jnp.float32)
        return gamma, beta

    w1, c1 = linear(0, *real[0], *padded[0])
    w2, c2 = linear(1, *real[1], *padded[1])
    w3, c3 = linear(2, *real[2], *padded[2])
    w4, c4 = linear(3, *real[3], *padded[3])

    # l5 : (50 -> 1), stored as a lane row for the VPU reduce.
    bound5 = 1.0 / (50.0 ** 0.5)
    w5 = jax.random.uniform(keys[8], (1, 50), jnp.float32, -bound5, bound5)
    w5 = jnp.pad(w5, ((0, 0), (0, 128 - 50)))                       # (1, 128) f32
    b5 = jax.random.uniform(keys[9], (1, 1), jnp.float32, -bound5, bound5)
    c5 = jnp.broadcast_to(b5, (1, 128)).astype(jnp.float32)         # (1, 128) f32

    g0, b0 = bn(in0, in0_p)
    g2, b2 = bn(300, 384)
    g4, b4 = bn(50, 128)

    return [g0, b0, w1, c1, w2, c2, g2, b2, w3, c3, w4, c4, g4, b4, w5, c5]


def critic_forward(x, u, params):
    # glue: concatenation + zero-padding stay in plain JAX; the hot path
    # (matmuls, BN reductions, relu) runs inside one fused Pallas kernel.
    xu = jnp.concatenate([x, u], axis=1).astype(jnp.float32)
    B, in0 = xu.shape
    in0_p = params[2].shape[0]          # padded in-dim of w1
    xu_p = jnp.pad(xu, ((0, 0), (0, in0_p - in0)))

    out_pad = params[-1].shape[1]       # 128
    h1p = params[2].shape[1]
    h2p = params[4].shape[1]
    h3p = params[8].shape[1]
    h4p = params[10].shape[1]

    flops = 2 * B * (in0_p * h1p + h1p * h2p + h2p * h3p + h3p * h4p + h4p)
    transcendentals = in0_p + h2p + h4p            # one rsqrt per BN feature
    bytes_accessed = (
        int(xu_p.size) * 4 + B * out_pad * 4
        + sum(int(p.size) * p.dtype.itemsize for p in params)
    )

    vmem_spec = pl.BlockSpec(memory_space=pltpu.MemorySpace.VMEM)
    n_inputs = 1 + len(params)

    out = pl.pallas_call(
        critic_kernel,
        out_shape=jax.ShapeDtypeStruct((B, out_pad), jnp.float32),
        in_specs=[vmem_spec] * n_inputs,
        out_specs=vmem_spec,
        cost_estimate=pl.CostEstimate(
            flops=flops,
            transcendentals=transcendentals,
            bytes_accessed=bytes_accessed,
        ),
    )(xu_p, *params)
    return out[:, :1]


def _critic_reference(xu_p, params):
    """Pure-JAX f32 reference on the same (padded, bf16-stored) params."""
    g0, b0, w1, c1, w2, c2, g2, b2, w3, c3, w4, c4, g4, b4, w5, c5 = params

    def bn(h, g, b):
        m = jnp.mean(h, axis=0, keepdims=True)
        v = jnp.mean((h - m) ** 2, axis=0, keepdims=True)
        return (h - m) * jax.lax.rsqrt(v + EPS) * g + b

    h = bn(xu_p, g0, b0)
    h = jax.nn.relu(h @ w1.astype(jnp.float32) + c1)
    h = h @ w2.astype(jnp.float32) + c2
    h = jax.nn.relu(bn(h, g2, b2))
    h = jax.nn.relu(h @ w3.astype(jnp.float32) + c3)
    h = h @ w4.astype(jnp.float32) + c4
    h = jax.nn.relu(bn(h, g4, b4))
    return jnp.sum(h * w5, axis=1, keepdims=True) + c5[:, :1]


if __name__ == "__main__":
    key = jax.random.PRNGKey(0)
    k_x, k_u, k_p = jax.random.split(key, 3)

    batch, state_dim, action_dim = 8, 16, 8
    x = jax.random.normal(k_x, (batch, state_dim), jnp.float32)
    u = jax.random.normal(k_u, (batch, action_dim), jnp.float32)

    params = init_critic_params(state_dim, action_dim, k_p)

    q = critic_forward(x, u, params)
    jax.block_until_ready(q)
    assert q.shape == (batch, 1)
    assert bool(jnp.all(jnp.isfinite(q)))

    # Loose check against a pure-JAX f32 reference (bf16 matmuls inside the
    # kernel introduce small numerical differences).
    xu = jnp.concatenate([x, u], axis=1)
    xu_p = jnp.pad(xu, ((0, 0), (0, params[2].shape[0] - xu.shape[1])))
    q_ref = _critic_reference(xu_p, params)
    max_err = float(jnp.max(jnp.abs(q - q_ref)))
    assert max_err < 0.25, f"mismatch vs reference: {max_err}"

    print("KERNEL_OK")
</pallas_src>

<mosaic_0001>
module attributes {stable_mosaic.version = 11 : i64} {
  func.func @critic_kernel(%arg0: memref<8x128xf32, #tpu.memory_space<vmem>>, %arg1: memref<1x128xf32, #tpu.memory_space<vmem>>, %arg2: memref<1x128xf32, #tpu.memory_space<vmem>>, %arg3: memref<128x512xbf16, #tpu.memory_space<vmem>>, %arg4: memref<1x512xf32, #tpu.memory_space<vmem>>, %arg5: memref<512x384xbf16, #tpu.memory_space<vmem>>, %arg6: memref<1x384xf32, #tpu.memory_space<vmem>>, %arg7: memref<1x384xf32, #tpu.memory_space<vmem>>, %arg8: memref<1x384xf32, #tpu.memory_space<vmem>>, %arg9: memref<384x384xbf16, #tpu.memory_space<vmem>>, %arg10: memref<1x384xf32, #tpu.memory_space<vmem>>, %arg11: memref<384x128xbf16, #tpu.memory_space<vmem>>, %arg12: memref<1x128xf32, #tpu.memory_space<vmem>>, %arg13: memref<1x128xf32, #tpu.memory_space<vmem>>, %arg14: memref<1x128xf32, #tpu.memory_space<vmem>>, %arg15: memref<1x128xf32, #tpu.memory_space<vmem>>, %arg16: memref<1x128xf32, #tpu.memory_space<vmem>>, %arg17: memref<8x128xf32, #tpu.memory_space<vmem>>) attributes {dimension_semantics = [], scalar_prefetch = 0 : i64, scratch_operands = 0 : i64, tpu.core_type = #tpu.core_type<tc>} {
    %c0 = arith.constant 0 : index
    %c0_0 = arith.constant 0 : index
    %0 = vector.load %arg0[%c0, %c0_0] : memref<8x128xf32, #tpu.memory_space<vmem>>, vector<8x128xf32>
    %c0_1 = arith.constant 0 : index
    %c0_2 = arith.constant 0 : index
    %1 = vector.load %arg1[%c0_1, %c0_2] : memref<1x128xf32, #tpu.memory_space<vmem>>, vector<1x128xf32>
    %c0_3 = arith.constant 0 : index
    %c0_4 = arith.constant 0 : index
    %2 = vector.load %arg2[%c0_3, %c0_4] : memref<1x128xf32, #tpu.memory_space<vmem>>, vector<1x128xf32>
    %cst = arith.constant dense<0.000000e+00> : vector<128xf32>
    %3 = vector.multi_reduction <add>, %0, %cst [0] : vector<8x128xf32> to vector<128xf32>
    %4 = vector.shape_cast %3 : vector<128xf32> to vector<1x128xf32>
    %5 = arith.mulf %0, %0 : vector<8x128xf32>
    %cst_5 = arith.constant dense<0.000000e+00> : vector<128xf32>
    %6 = vector.multi_reduction <add>, %5, %cst_5 [0] : vector<8x128xf32> to vector<128xf32>
    %7 = vector.shape_cast %6 : vector<128xf32> to vector<1x128xf32>
    %cst_6 = arith.constant 1.250000e-01 : f32
    %8 = vector.broadcast %cst_6 : f32 to vector<1x128xf32>
    %9 = arith.mulf %4, %8 : vector<1x128xf32>
    %cst_7 = arith.constant 1.250000e-01 : f32
    %10 = vector.broadcast %cst_7 : f32 to vector<1x128xf32>
    %11 = arith.mulf %7, %10 : vector<1x128xf32>
    %12 = arith.mulf %9, %9 : vector<1x128xf32>
    %13 = arith.subf %11, %12 : vector<1x128xf32>
    %cst_8 = arith.constant 0.000000e+00 : f32
    %14 = vector.broadcast %cst_8 : f32 to vector<1x128xf32>
    %15 = arith.maximumf %13, %14 : vector<1x128xf32>
    %cst_9 = arith.constant 9.99999974E-6 : f32
    %16 = vector.broadcast %cst_9 : f32 to vector<1x128xf32>
    %17 = arith.addf %15, %16 : vector<1x128xf32>
    %18 = math.rsqrt %17 : vector<1x128xf32>
    %19 = arith.mulf %1, %18 : vector<1x128xf32>
    %20 = arith.mulf %9, %19 : vector<1x128xf32>
    %21 = arith.subf %2, %20 : vector<1x128xf32>
    %22 = vector.broadcast %19 : vector<1x128xf32> to vector<8x128xf32>
    %23 = arith.mulf %0, %22 : vector<8x128xf32>
    %24 = vector.broadcast %21 : vector<1x128xf32> to vector<8x128xf32>
    %25 = arith.addf %23, %24 : vector<8x128xf32>
    %26 = arith.truncf %25 : vector<8x128xf32> to vector<8x128xbf16>
    %c0_10 = arith.constant 0 : index
    %c0_11 = arith.constant 0 : index
    %27 = vector.load %arg3[%c0_10, %c0_11] : memref<128x512xbf16, #tpu.memory_space<vmem>>, vector<128x512xbf16>
    %cst_12 = arith.constant dense<0.000000e+00> : vector<8x512xf32>
    %28 = tpu.matmul %26, %27, %cst_12 {dimension_numbers = #tpu.dot_dimension_numbers<[1], [0], [0], [1], [0, 0, 1, 1], [], []>} : vector<8x128xbf16>, vector<128x512xbf16>, vector<8x512xf32> -> vector<8x512xf32>
    %c0_13 = arith.constant 0 : index
    %c0_14 = arith.constant 0 : index
    %29 = vector.load %arg4[%c0_13, %c0_14] : memref<1x512xf32, #tpu.memory_space<vmem>>, vector<1x512xf32>
    %30 = vector.broadcast %29 : vector<1x512xf32> to vector<8x512xf32>
    %31 = arith.addf %28, %30 : vector<8x512xf32>
    %cst_15 = arith.constant 0.000000e+00 : f32
    %32 = vector.broadcast %cst_15 : f32 to vector<8x512xf32>
    %33 = arith.maximumf %31, %32 : vector<8x512xf32>
    %34 = arith.truncf %33 : vector<8x512xf32> to vector<8x512xbf16>
    %c0_16 = arith.constant 0 : index
    %c0_17 = arith.constant 0 : index
    %35 = vector.load %arg5[%c0_16, %c0_17] : memref<512x384xbf16, #tpu.memory_space<vmem>>, vector<512x384xbf16>
    %cst_18 = arith.constant dense<0.000000e+00> : vector<8x384xf32>
    %36 = tpu.matmul %34, %35, %cst_18 {dimension_numbers = #tpu.dot_dimension_numbers<[1], [0], [0], [1], [0, 0, 1, 1], [], []>} : vector<8x512xbf16>, vector<512x384xbf16>, vector<8x384xf32> -> vector<8x384xf32>
    %c0_19 = arith.constant 0 : index
    %c0_20 = arith.constant 0 : index
    %37 = vector.load %arg6[%c0_19, %c0_20] : memref<1x384xf32, #tpu.memory_space<vmem>>, vector<1x384xf32>
    %38 = vector.broadcast %37 : vector<1x384xf32> to vector<8x384xf32>
    %39 = arith.addf %36, %38 : vector<8x384xf32>
    %c0_21 = arith.constant 0 : index
    %c0_22 = arith.constant 0 : index
    %40 = vector.load %arg7[%c0_21, %c0_22] : memref<1x384xf32, #tpu.memory_space<vmem>>, vector<1x384xf32>
    %c0_23 = arith.constant 0 : index
    %c0_24 = arith.constant 0 : index
    %41 = vector.load %arg8[%c0_23, %c0_24] : memref<1x384xf32, #tpu.memory_space<vmem>>, vector<1x384xf32>
    %cst_25 = arith.constant dense<0.000000e+00> : vector<384xf32>
    %42 = vector.multi_reduction <add>, %39, %cst_25 [0] : vector<8x384xf32> to vector<384xf32>
    %43 = vector.shape_cast %42 : vector<384xf32> to vector<1x384xf32>
    %44 = arith.mulf %39, %39 : vector<8x384xf32>
    %cst_26 = arith.constant dense<0.000000e+00> : vector<384xf32>
    %45 = vector.multi_reduction <add>, %44, %cst_26 [0] : vector<8x384xf32> to vector<384xf32>
    %46 = vector.shape_cast %45 : vector<384xf32> to vector<1x384xf32>
    %cst_27 = arith.constant 1.250000e-01 : f32
    %47 = vector.broadcast %cst_27 : f32 to vector<1x384xf32>
    %48 = arith.mulf %43, %47 : vector<1x384xf32>
    %cst_28 = arith.constant 1.250000e-01 : f32
    %49 = vector.broadcast %cst_28 : f32 to vector<1x384xf32>
    %50 = arith.mulf %46, %49 : vector<1x384xf32>
    %51 = arith.mulf %48, %48 : vector<1x384xf32>
    %52 = arith.subf %50, %51 : vector<1x384xf32>
    %cst_29 = arith.constant 0.000000e+00 : f32
    %53 = vector.broadcast %cst_29 : f32 to vector<1x384xf32>
    %54 = arith.maximumf %52, %53 : vector<1x384xf32>
    %cst_30 = arith.constant 9.99999974E-6 : f32
    %55 = vector.broadcast %cst_30 : f32 to vector<1x384xf32>
    %56 = arith.addf %54, %55 : vector<1x384xf32>
    %57 = math.rsqrt %56 : vector<1x384xf32>
    %58 = arith.mulf %40, %57 : vector<1x384xf32>
    %59 = arith.mulf %48, %58 : vector<1x384xf32>
    %60 = arith.subf %41, %59 : vector<1x384xf32>
    %61 = vector.broadcast %58 : vector<1x384xf32> to vector<8x384xf32>
    %62 = arith.mulf %39, %61 : vector<8x384xf32>
    %63 = vector.broadcast %60 : vector<1x384xf32> to vector<8x384xf32>
    %64 = arith.addf %62, %63 : vector<8x384xf32>
    %cst_31 = arith.constant 0.000000e+00 : f32
    %65 = vector.broadcast %cst_31 : f32 to vector<8x384xf32>
    %66 = arith.maximumf %64, %65 : vector<8x384xf32>
    %67 = arith.truncf %66 : vector<8x384xf32> to vector<8x384xbf16>
    %c0_32 = arith.constant 0 : index
    %c0_33 = arith.constant 0 : index
    %68 = vector.load %arg9[%c0_32, %c0_33] : memref<384x384xbf16, #tpu.memory_space<vmem>>, vector<384x384xbf16>
    %cst_34 = arith.constant dense<0.000000e+00> : vector<8x384xf32>
    %69 = tpu.matmul %67, %68, %cst_34 {dimension_numbers = #tpu.dot_dimension_numbers<[1], [0], [0], [1], [0, 0, 1, 1], [], []>} : vector<8x384xbf16>, vector<384x384xbf16>, vector<8x384xf32> -> vector<8x384xf32>
    %c0_35 = arith.constant 0 : index
    %c0_36 = arith.constant 0 : index
    %70 = vector.load %arg10[%c0_35, %c0_36] : memref<1x384xf32, #tpu.memory_space<vmem>>, vector<1x384xf32>
    %71 = vector.broadcast %70 : vector<1x384xf32> to vector<8x384xf32>
    %72 = arith.addf %69, %71 : vector<8x384xf32>
    %cst_37 = arith.constant 0.000000e+00 : f32
    %73 = vector.broadcast %cst_37 : f32 to vector<8x384xf32>
    %74 = arith.maximumf %72, %73 : vector<8x384xf32>
    %75 = arith.truncf %74 : vector<8x384xf32> to vector<8x384xbf16>
    %c0_38 = arith.constant 0 : index
    %c0_39 = arith.constant 0 : index
    %76 = vector.load %arg11[%c0_38, %c0_39] : memref<384x128xbf16, #tpu.memory_space<vmem>>, vector<384x128xbf16>
    %cst_40 = arith.constant dense<0.000000e+00> : vector<8x128xf32>
    %77 = tpu.matmul %75, %76, %cst_40 {dimension_numbers = #tpu.dot_dimension_numbers<[1], [0], [0], [1], [0, 0, 1, 1], [], []>} : vector<8x384xbf16>, vector<384x128xbf16>, vector<8x128xf32> -> vector<8x128xf32>
    %c0_41 = arith.constant 0 : index
    %c0_42 = arith.constant 0 : index
    %78 = vector.load %arg12[%c0_41, %c0_42] : memref<1x128xf32, #tpu.memory_space<vmem>>, vector<1x128xf32>
    %79 = vector.broadcast %78 : vector<1x128xf32> to vector<8x128xf32>
    %80 = arith.addf %77, %79 : vector<8x128xf32>
    %c0_43 = arith.constant 0 : index
    %c0_44 = arith.constant 0 : index
    %81 = vector.load %arg13[%c0_43, %c0_44] : memref<1x128xf32, #tpu.memory_space<vmem>>, vector<1x128xf32>
    %c0_45 = arith.constant 0 : index
    %c0_46 = arith.constant 0 : index
    %82 = vector.load %arg14[%c0_45, %c0_46] : memref<1x128xf32, #tpu.memory_space<vmem>>, vector<1x128xf32>
    %cst_47 = arith.constant dense<0.000000e+00> : vector<128xf32>
    %83 = vector.multi_reduction <add>, %80, %cst_47 [0] : vector<8x128xf32> to vector<128xf32>
    %84 = vector.shape_cast %83 : vector<128xf32> to vector<1x128xf32>
    %85 = arith.mulf %80, %80 : vector<8x128xf32>
    %cst_48 = arith.constant dense<0.000000e+00> : vector<128xf32>
    %86 = vector.multi_reduction <add>, %85, %cst_48 [0] : vector<8x128xf32> to vector<128xf32>
    %87 = vector.shape_cast %86 : vector<128xf32> to vector<1x128xf32>
    %cst_49 = arith.constant 1.250000e-01 : f32
    %88 = vector.broadcast %cst_49 : f32 to vector<1x128xf32>
    %89 = arith.mulf %84, %88 : vector<1x128xf32>
    %cst_50 = arith.constant 1.250000e-01 : f32
    %90 = vector.broadcast %cst_50 : f32 to vector<1x128xf32>
    %91 = arith.mulf %87, %90 : vector<1x128xf32>
    %92 = arith.mulf %89, %89 : vector<1x128xf32>
    %93 = arith.subf %91, %92 : vector<1x128xf32>
    %cst_51 = arith.constant 0.000000e+00 : f32
    %94 = vector.broadcast %cst_51 : f32 to vector<1x128xf32>
    %95 = arith.maximumf %93, %94 : vector<1x128xf32>
    %cst_52 = arith.constant 9.99999974E-6 : f32
    %96 = vector.broadcast %cst_52 : f32 to vector<1x128xf32>
    %97 = arith.addf %95, %96 : vector<1x128xf32>
    %98 = math.rsqrt %97 : vector<1x128xf32>
    %99 = arith.mulf %81, %98 : vector<1x128xf32>
    %100 = arith.mulf %89, %99 : vector<1x128xf32>
    %101 = arith.subf %82, %100 : vector<1x128xf32>
    %102 = vector.broadcast %99 : vector<1x128xf32> to vector<8x128xf32>
    %103 = arith.mulf %80, %102 : vector<8x128xf32>
    %104 = vector.broadcast %101 : vector<1x128xf32> to vector<8x128xf32>
    %105 = arith.addf %103, %104 : vector<8x128xf32>
    %cst_53 = arith.constant 0.000000e+00 : f32
    %106 = vector.broadcast %cst_53 : f32 to vector<8x128xf32>
    %107 = arith.maximumf %105, %106 : vector<8x128xf32>
    %c0_54 = arith.constant 0 : index
    %c0_55 = arith.constant 0 : index
    %108 = vector.load %arg15[%c0_54, %c0_55] : memref<1x128xf32, #tpu.memory_space<vmem>>, vector<1x128xf32>
    %109 = vector.broadcast %108 : vector<1x128xf32> to vector<8x128xf32>
    %110 = arith.mulf %107, %109 : vector<8x128xf32>
    %cst_56 = arith.constant dense<0.000000e+00> : vector<8xf32>
    %111 = vector.multi_reduction <add>, %110, %cst_56 [1] : vector<8x128xf32> to vector<8xf32>
    %112 = vector.shape_cast %111 : vector<8xf32> to vector<8x1xf32>
    %113 = vector.shape_cast %112 : vector<8x1xf32> to vector<8x1xf32>
    %114 = vector.broadcast %113 : vector<8x1xf32> to vector<8x128xf32>
    %c0_57 = arith.constant 0 : index
    %c0_58 = arith.constant 0 : index
    %115 = vector.load %arg16[%c0_57, %c0_58] : memref<1x128xf32, #tpu.memory_space<vmem>>, vector<1x128xf32>
    %116 = vector.broadcast %115 : vector<1x128xf32> to vector<8x128xf32>
    %117 = arith.addf %114, %116 : vector<8x128xf32>
    %c0_59 = arith.constant 0 : index
    %c0_60 = arith.constant 0 : index
    %118 = vector.load %arg17[%c0_59, %c0_60] : memref<8x128xf32, #tpu.memory_space<vmem>>, vector<8x128xf32>
    tpu.vector_store %arg17[%c0_59, %c0_60], %117 {strides = array<i32>} : memref<8x128xf32, #tpu.memory_space<vmem>>, vector<8x128xf32>,
    return
  }
}

</mosaic_0001>

<llo_original>
// kernel: tpu_custom_call.1
$region0: #{tpu_custom_call.1}
  #allocation0 [shape = 'u32[]', space=smem, size = 0x4, offset = 0x4, fixed_abs, tag = 'smem constant byte address 0x4 - core index']
  #allocation1 [shape = 'u32[144,128]{1,0:T(1,128)}', space=vmem, size = 0x12000, scoped, tag = 'internal scratch']
  %s0 = inlined_call_operand.hbm [shape: f32[8,128], index: 0, kind: input, shape index: {}]
  %s1 = inlined_call_operand.hbm [shape: f32[1,128], index: 1, kind: input, shape index: {}]
  %s2 = inlined_call_operand.hbm [shape: f32[1,128], index: 2, kind: input, shape index: {}]
  %s3 = inlined_call_operand.hbm [shape: bf16[128,512], index: 3, kind: input, shape index: {}]
  %s4 = inlined_call_operand.vmem [shape: f32[1,512], index: 4, kind: input, shape index: {}]
  %s5 = inlined_call_operand.hbm [shape: bf16[512,384], index: 5, kind: input, shape index: {}]
  %s6 = inlined_call_operand.vmem [shape: f32[1,384], index: 6, kind: input, shape index: {}]
  %s7 = inlined_call_operand.vmem [shape: f32[1,384], index: 7, kind: input, shape index: {}]
  %s8 = inlined_call_operand.vmem [shape: f32[1,384], index: 8, kind: input, shape index: {}]
  %s9 = inlined_call_operand.hbm [shape: bf16[384,384], index: 9, kind: input, shape index: {}]
  %s10 = inlined_call_operand.vmem [shape: f32[1,384], index: 10, kind: input, shape index: {}]
  %s11 = inlined_call_operand.hbm [shape: bf16[384,128], index: 11, kind: input, shape index: {}]
  %s12 = inlined_call_operand.vmem [shape: f32[1,128], index: 12, kind: input, shape index: {}]
  %s13 = inlined_call_operand.vmem [shape: f32[1,128], index: 13, kind: input, shape index: {}]
  %s14 = inlined_call_operand.vmem [shape: f32[1,128], index: 14, kind: input, shape index: {}]
  %s15 = inlined_call_operand.vmem [shape: f32[1,128], index: 15, kind: input, shape index: {}]
  %s16 = inlined_call_operand.vmem [shape: f32[1,128], index: 16, kind: input, shape index: {}]
  %s17 = inlined_call_operand.hbm [shape: f32[8,128], index: 17, kind: output, shape index: {}]
  %s18 = sld [smem:[#allocation0]]
  $region106: #{tpu_custom_call.1} parent=0
    _
  %s20 = ssub.s32 1, %s18
  %s21 = scalar_select 0, %s20, %s18
  $region1: #{tpu_custom_call.1} parent=0
    #allocation2 [shape = 'u8[4096]{0}', space=vmem, size = 0x1000, scoped, tag = 'input window, operand 0, single buffered']
    #allocation3 [shape = 's32[1]{0}', space=sflag, size = 0x4, scoped, tag = 'scoped memory for tpu_custom_call.1']
    #allocation4 [shape = 's32[1]{0}', space=sflag, size = 0x4, scoped, tag = 'scoped memory for tpu_custom_call.1']
    #allocation5 [shape = 'u8[512]{0}', space=vmem, size = 0x400, scoped, tag = 'input window, operand 1, single buffered']
    #allocation6 [shape = 's32[1]{0}', space=sflag, size = 0x4, scoped, tag = 'scoped memory for tpu_custom_call.1']
    #allocation7 [shape = 'u8[512]{0}', space=vmem, size = 0x400, scoped, tag = 'input window, operand 2, single buffered']
    #allocation8 [shape = 'u8[131072]{0}', space=vmem, size = 0x20000, scoped, tag = 'input window, operand 3, single buffered']
    #allocation9 [shape = 's32[1]{0}', space=sflag, size = 0x4, scoped, tag = 'scoped memory for tpu_custom_call.1']
    #allocation10 [shape = 'u8[393216]{0}', space=vmem, size = 0x60000, scoped, tag = 'input window, operand 5, single buffered']
    #allocation11 [shape = 'u8[294912]{0}', space=vmem, size = 0x48000, scoped, tag = 'input window, operand 9, single buffered']
    #allocation12 [shape = 's32[1]{0}', space=sflag, size = 0x4, scoped, tag = 'scoped memory for tpu_custom_call.1']
    #allocation13 [shape = 'u8[98304]{0}', space=vmem, size = 0x18000, scoped, tag = 'input window, operand 11, single buffered']
    #allocation14 [shape = 'u8[4096]{0}', space=vmem, size = 0x1000, scoped, tag = 'output window, operand 0, single buffered']
    %22 = vsyncpa [#allocation3], 0
    %23 = vsyncpa [#allocation6], 0
    %24 = vsyncpa [#allocation9], 0
    %25 = vsyncpa [#allocation12], 0
    %26 = vsyncpa [#allocation4], 0
    // Predicated region
    $region2: #{tpu_custom_call.1} parent=1 // pred_check
      _
    $region3: #{tpu_custom_call.1} parent=1 // pred_check_branch
      %28 = sbr.rel (0) target = $region5
    $region4: #{tpu_custom_call.1} parent=1 // pred_region
      %s30 = ssub.s32 128, 128
      %31 = vsyncadd [#allocation3], %s30
      %s33 = sshll.u32 [#allocation2], 4
      %s34 = int_to_ptr.vmem [resolvable:$true] %s33
      %36 = dma.hbm_to_vmem [thread:$0]  %s0, 128, %s34, [#allocation3]
    $region5: #{tpu_custom_call.1} parent=1 // pred_fallthru
      _
    // Predicated region
    $region6: #{tpu_custom_call.1} parent=1 // pred_check
      _
    $region7: #{tpu_custom_call.1} parent=1 // pred_check_branch
      %38 = sbr.rel (0) target = $region9
    $region8: #{tpu_custom_call.1} parent=1 // pred_region
      %s40 = ssub.s32 16, 16
      %41 = vsyncadd [#allocation6], %s40
      %s43 = sshll.u32 [#allocation5], 4
      %s44 = int_to_ptr.vmem [resolvable:$true] %s43
      %46 = dma.hbm_to_vmem [thread:$0]  %s1, 16, %s44, [#allocation6]
    $region9: #{tpu_custom_call.1} parent=1 // pred_fallthru
      _
    // Predicated region
    $region10: #{tpu_custom_call.1} parent=1 // pred_check
      _
    $region11: #{tpu_custom_call.1} parent=1 // pred_check_branch
      %48 = sbr.rel (0) target = $region13
    $region12: #{tpu_custom_call.1} parent=1 // pred_region
      %s50 = ssub.s32 16, 16
      %51 = vsyncadd [#allocation6], %s50
      %s53 = sshll.u32 [#allocation7], 4
      %s54 = int_to_ptr.vmem [resolvable:$true] %s53
      %56 = dma.hbm_to_vmem [thread:$0]  %s2, 16, %s54, [#allocation6]
    $region13: #{tpu_custom_call.1} parent=1 // pred_fallthru
      _
    // Predicated region
    $region14: #{tpu_custom_call.1} parent=1 // pred_check
      _
    $region15: #{tpu_custom_call.1} parent=1 // pred_check_branch
      %58 = sbr.rel (0) target = $region17
    $region16: #{tpu_custom_call.1} parent=1 // pred_region
      %s60 = ssub.s32 4096, 4096
      %61 = vsyncadd [#allocation9], %s60
      %s62 = sshll.u32 [#allocation8], 4
      %s63 = int_to_ptr.vmem [resolvable:$true] %s62
      %68 = dma.hbm_to_vmem [thread:$0]  %s3, 4096, %s63, [#allocation9], 256, 256, 16
    $region17: #{tpu_custom_call.1} parent=1 // pred_fallthru
      _
    // Predicated region
    $region18: #{tpu_custom_call.1} parent=1 // pred_check
      _
    $region19: #{tpu_custom_call.1} parent=1 // pred_check_branch
      %70 = sbr.rel (0) target = $region21
    $region20: #{tpu_custom_call.1} parent=1 // pred_region
      _
    $region21: #{tpu_custom_call.1} parent=1 // pred_fallthru
      _
    // Predicated region
    $region22: #{tpu_custom_call.1} parent=1 // pred_check
      _
    $region23: #{tpu_custom_call.1} parent=1 // pred_check_branch
      %72 = sbr.rel (0) target = $region25
    $region24: #{tpu_custom_call.1} parent=1 // pred_region
      %s74 = ssub.s32 12288, 12288
      %75 = vsyncadd [#allocation9], %s74
      %s76 = sshll.u32 [#allocation10], 4
      %s77 = int_to_ptr.vmem [resolvable:$true] %s76
      %82 = dma.hbm_to_vmem [thread:$0]  %s5, 12288, %s77, [#allocation9], 192, 192, 12
    $region25: #{tpu_custom_call.1} parent=1 // pred_fallthru
      _
    // Predicated region
    $region26: #{tpu_custom_call.1} parent=1 // pred_check
      _
    $region27: #{tpu_custom_call.1} parent=1 // pred_check_branch
      %84 = sbr.rel (0) target = $region29
    $region28: #{tpu_custom_call.1} parent=1 // pred_region
      _
    $region29: #{tpu_custom_call.1} parent=1 // pred_fallthru
      _
    // Predicated region
    $region30: #{tpu_custom_call.1} parent=1 // pred_check
      _
    $region31: #{tpu_custom_call.1} parent=1 // pred_check_branch
      %86 = sbr.rel (0) target = $region33
    $region32: #{tpu_custom_call.1} parent=1 // pred_region
      _
    $region33: #{tpu_custom_call.1} parent=1 // pred_fallthru
      _
    // Predicated region
    $region34: #{tpu_custom_call.1} parent=1 // pred_check
      _
    $region35: #{tpu_custom_call.1} parent=1 // pred_check_branch
      %88 = sbr.rel (0) target = $region37
    $region36: #{tpu_custom_call.1} parent=1 // pred_region
      _
    $region37: #{tpu_custom_call.1} parent=1 // pred_fallthru
      _
    // Predicated region
    $region38: #{tpu_custom_call.1} parent=1 // pred_check
      _
    $region39: #{tpu_custom_call.1} parent=1 // pred_check_branch
      %90 = sbr.rel (0) target = $region41
    $region40: #{tpu_custom_call.1} parent=1 // pred_region
      %s92 = ssub.s32 9216, 9216
      %93 = vsyncadd [#allocation12], %s92
      %s94 = sshll.u32 [#allocation11], 4
      %s95 = int_to_ptr.vmem [resolvable:$true] %s94
      %100 = dma.hbm_to_vmem [thread:$0]  %s9, 9216, %s95, [#allocation12], 192, 192, 12
    $region41: #{tpu_custom_call.1} parent=1 // pred_fallthru
      _
    // Predicated region
    $region42: #{tpu_custom_call.1} parent=1 // pred_check
      _
    $region43: #{tpu_custom_call.1} parent=1 // pred_check_branch
      %102 = sbr.rel (0) target = $region45
    $region44: #{tpu_custom_call.1} parent=1 // pred_region
      _
    $region45: #{tpu_custom_call.1} parent=1 // pred_fallthru
      _
    // Predicated region
    $region46: #{tpu_custom_call.1} parent=1 // pred_check
      _
    $region47: #{tpu_custom_call.1} parent=1 // pred_check_branch
      %104 = sbr.rel (0) target = $region49
    $region48: #{tpu_custom_call.1} parent=1 // pred_region
      %s106 = ssub.s32 3072, 3072
      %107 = vsyncadd [#allocation12], %s106
      %s108 = sshll.u32 [#allocation13], 4
      %s109 = int_to_ptr.vmem [resolvable:$true] %s108
      %114 = dma.hbm_to_vmem [thread:$0]  %s11, 3072, %s109, [#allocation12], 64, 64, 4
    $region49: #{tpu_custom_call.1} parent=1 // pred_fallthru
      _
    // Predicated region
    $region50: #{tpu_custom_call.1} parent=1 // pred_check
      _
    $region51: #{tpu_custom_call.1} parent=1 // pred_check_branch
      %116 = sbr.rel (0) target = $region53
    $region52: #{tpu_custom_call.1} parent=1 // pred_region
      _
    $region53: #{tpu_custom_call.1} parent=1 // pred_fallthru
      _
    // Predicated region
    $region54: #{tpu_custom_call.1} parent=1 // pred_check
      _
    $region55: #{tpu_custom_call.1} parent=1 // pred_check_branch
      %118 = sbr.rel (0) target = $region57
    $region56: #{tpu_custom_call.1} parent=1 // pred_region
      _
    $region57: #{tpu_custom_call.1} parent=1 // pred_fallthru
      _
    // Predicated region
    $region58: #{tpu_custom_call.1} parent=1 // pred_check
      _
    $region59: #{tpu_custom_call.1} parent=1 // pred_check_branch
      %120 = sbr.rel (0) target = $region61
    $region60: #{tpu_custom_call.1} parent=1 // pred_region
      _
    $region61: #{tpu_custom_call.1} parent=1 // pred_fallthru
      _
    // Predicated region
    $region62: #{tpu_custom_call.1} parent=1 // pred_check
      _
    $region63: #{tpu_custom_call.1} parent=1 // pred_check_branch
      %122 = sbr.rel (0) target = $region65
    $region64: #{tpu_custom_call.1} parent=1 // pred_region
      _
    $region65: #{tpu_custom_call.1} parent=1 // pred_fallthru
      _
    // Predicated region
    $region66: #{tpu_custom_call.1} parent=1 // pred_check
      _
    $region67: #{tpu_custom_call.1} parent=1 // pred_check_branch
      %124 = sbr.rel (0) target = $region69
    $region68: #{tpu_custom_call.1} parent=1 // pred_region
      _
    $region69: #{tpu_custom_call.1} parent=1 // pred_fallthru
      _
    // Predicated region
    $region70: #{tpu_custom_call.1} parent=1 // pred_check
      _
    $region71: #{tpu_custom_call.1} parent=1 // pred_check_branch
      %126 = sbr.rel (0) target = $region73
    $region72: #{tpu_custom_call.1} parent=1 // pred_region
      %127 = dma.done [#allocation3], 128
    $region73: #{tpu_custom_call.1} parent=1 // pred_fallthru
      _
    // Predicated region
    $region74: #{tpu_custom_call.1} parent=1 // pred_check
      _
    $region75: #{tpu_custom_call.1} parent=1 // pred_check_branch
      %129 = sbr.rel (0) target = $region77
    $region76: #{tpu_custom_call.1} parent=1 // pred_region
      %130 = dma.done [#allocation6], 16
    $region77: #{tpu_custom_call.1} parent=1 // pred_fallthru
      _
    // Predicated region
    $region78: #{tpu_custom_call.1} parent=1 // pred_check
      _
    $region79: #{tpu_custom_call.1} parent=1 // pred_check_branch
      %132 = sbr.rel (0) target = $region81
    $region80: #{tpu_custom_call.1} parent=1 // pred_region
      %133 = dma.done [#allocation6], 16
    $region81: #{tpu_custom_call.1} parent=1 // pred_fallthru
      _
    // Predicated region
    $region82: #{tpu_custom_call.1} parent=1 // pred_check
      _
    $region83: #{tpu_custom_call.1} parent=1 // pred_check_branch
      %135 = sbr.rel (0) target = $region85
    $region84: #{tpu_custom_call.1} parent=1 // pred_region
      %136 = dma.done [#allocation9], 4096
    $region85: #{tpu_custom_call.1} parent=1 // pred_fallthru
      _
    // Predicated region
    $region86: #{tpu_custom_call.1} parent=1 // pred_check
      _
    $region87: #{tpu_custom_call.1} parent=1 // pred_check_branch
      %138 = sbr.rel (0) target = $region89
    $region88: #{tpu_custom_call.1} parent=1 // pred_region
      %139 = dma.done [#allocation9], 12288
    $region89: #{tpu_custom_call.1} parent=1 // pred_fallthru
      _
    // Predicated region
    $region90: #{tpu_custom_call.1} parent=1 // pred_check
      _
    $region91: #{tpu_custom_call.1} parent=1 // pred_check_branch
      %141 = sbr.rel (0) target = $region93
    $region92: #{tpu_custom_call.1} parent=1 // pred_region
      %142 = dma.done [#allocation12], 9216
    $region93: #{tpu_custom_call.1} parent=1 // pred_fallthru
      _
    // Predicated region
    $region94: #{tpu_custom_call.1} parent=1 // pred_check
      _
    $region95: #{tpu_custom_call.1} parent=1 // pred_check_branch
      %144 = sbr.rel (0) target = $region97
    $region96: #{tpu_custom_call.1} parent=1 // pred_region
      %145 = dma.done [#allocation12], 3072
    $region97: #{tpu_custom_call.1} parent=1 // pred_fallthru
      _
    %v147 = vld [vmem:[#allocation2] sm:$0xff]
    %v148 = vld [vmem:[#allocation5] sm:$0x1]
    %v149 = vld [vmem:[#allocation7] sm:$0x1]
    %v150 = vrot.slane %v147, 4
    %v151 = vadd.f32 %v147, %v150
    %v152 = vrot.slane %v151, 2
    %v153 = vadd.f32 %v151, %v152
    %v154 = vrot.slane %v153, 1
    %v155 = vadd.f32 %v153, %v154
    %v156 = vmul.f32 %v147, %v147
    %v157 = vrot.slane %v156, 4
    %v158 = vadd.f32 %v156, %v157
    %v159 = vrot.slane %v158, 2
    %v160 = vadd.f32 %v158, %v159
    %v161 = vrot.slane %v160, 1
    %v162 = vadd.f32 %v160, %v161
    %v163 = vmul.f32 %v155, 0.125
    %v164 = vmul.f32 %v162, 0.125
    %v165 = vmul.f32 %v163, %v163
    %v166 = vsub.f32 %v164, %v165
    %v167 = vmax.f32 %v166, 0.0
    %v168 = vadd.f32 %v167, 1e-05
    %v169 = vrsqrt.pop %v168
    %v170 = vmul.f32 %v148, %v169
    %v171 = vmul.f32 %v163, %v170
    %v172 = vsub.f32 %v149, %v171
    %v174 = vlaneseq
    %v175 = vshrl.u32 %v174, 7
    %v176 = vsub.s32 0, %v175
    %v177 = vrot.slane %v170, %v176
    %v179 = vmul.f32 %v147, %v177
    %v181 = vlaneseq
    %v182 = vshrl.u32 %v181, 7
    %v183 = vsub.s32 0, %v182
    %v184 = vrot.slane %v172, %v183
    %v186 = vadd.f32 %v179, %v184
    %v187 = vpack.c.bf16 %v186, %v186
    %v188 = vld [vmem:[#allocation8] sm:$0xff]
    %v189 = vld [vmem:[#allocation8 + $0x8] sm:$0xff]
    %v190 = vld [vmem:[#allocation8 + $0x10] sm:$0xff]
    %v191 = vld [vmem:[#allocation8 + $0x18] sm:$0xff]
    %v192 = vld [vmem:[#allocation8 + $0x20] sm:$0xff]
    %v193 = vld [vmem:[#allocation8 + $0x28] sm:$0xff]
    %v194 = vld [vmem:[#allocation8 + $0x30] sm:$0xff]
    %v195 = vld [vmem:[#allocation8 + $0x38] sm:$0xff]
    %v196 = vld [vmem:[#allocation8 + $0x40] sm:$0xff]
    %v197 = vld [vmem:[#allocation8 + $0x48] sm:$0xff]
    %v198 = vld [vmem:[#allocation8 + $0x50] sm:$0xff]
    %v199 = vld [vmem:[#allocation8 + $0x58] sm:$0xff]
    %v200 = vld [vmem:[#allocation8 + $0x60] sm:$0xff]
    %v201 = vld [vmem:[#allocation8 + $0x68] sm:$0xff]
    %v202 = vld [vmem:[#allocation8 + $0x70] sm:$0xff]
    %v203 = vld [vmem:[#allocation8 + $0x78] sm:$0xff]
    %v204 = vld [vmem:[#allocation8 + $0x80] sm:$0xff]
    %v205 = vld [vmem:[#allocation8 + $0x88] sm:$0xff]
    %v206 = vld [vmem:[#allocation8 + $0x90] sm:$0xff]
    %v207 = vld [vmem:[#allocation8 + $0x98] sm:$0xff]
    %v208 = vld [vmem:[#allocation8 + $0xa0] sm:$0xff]
    %v209 = vld [vmem:[#allocation8 + $0xa8] sm:$0xff]
    %v210 = vld [vmem:[#allocation8 + $0xb0] sm:$0xff]
    %v211 = vld [vmem:[#allocation8 + $0xb8] sm:$0xff]
    %v212 = vld [vmem:[#allocation8 + $0xc0] sm:$0xff]
    %v213 = vld [vmem:[#allocation8 + $0xc8] sm:$0xff]
    %v214 = vld [vmem:[#allocation8 + $0xd0] sm:$0xff]
    %v215 = vld [vmem:[#allocation8 + $0xd8] sm:$0xff]
    %v216 = vld [vmem:[#allocation8 + $0xe0] sm:$0xff]
    %v217 = vld [vmem:[#allocation8 + $0xe8] sm:$0xff]
    %v218 = vld [vmem:[#allocation8 + $0xf0] sm:$0xff]
    %v219 = vld [vmem:[#allocation8 + $0xf8] sm:$0xff]
    %v220 = vld [vmem:[%s4] sm:$0xf]
    %v222 = vlaneseq
    %v223 = vshrl.u32 %v222, 7
    %v224 = vsub.s32 0, %v223
    %v225 = vrot.slane %v220, %v224
    %v226 = vlaneseq
    %v227 = vshrl.u32 %v226, 7
    %v228 = vsub.s32 1, %v227
    %v229 = vrot.slane %v220, %v228
    %v230 = vlaneseq
    %v231 = vshrl.u32 %v230, 7
    %v232 = vsub.s32 2, %v231
    %v233 = vrot.slane %v220, %v232
    %v234 = vlaneseq
    %v235 = vshrl.u32 %v234, 7
    %v236 = vsub.s32 3, %v235
    %v237 = vrot.slane %v220, %v236
    %v274 = vunpack.c.l.b16 %v188
    %v275 = vunpack.c.h.b16 %v188
    %v276 = vunpack.c.l.b16 %v189
    %v277 = vunpack.c.h.b16 %v189
    %v278 = vunpack.c.l.b16 %v190
    %v279 = vunpack.c.h.b16 %v190
    %v280 = vunpack.c.l.b16 %v191
    %v281 = vunpack.c.h.b16 %v191
    %v282 = vunpack.c.l.b16 %v192
    %v283 = vunpack.c.h.b16 %v192
    %v284 = vunpack.c.l.b16 %v193
    %v285 = vunpack.c.h.b16 %v193
    %v286 = vunpack.c.l.b16 %v194
    %v287 = vunpack.c.h.b16 %v194
    %v288 = vunpack.c.l.b16 %v195
    %v289 = vunpack.c.h.b16 %v195
    %v290 = vunpack.c.l.b16 %v196
    %v291 = vunpack.c.h.b16 %v196
    %v292 = vunpack.c.l.b16 %v197
    %v293 = vunpack.c.h.b16 %v197
    %v294 = vunpack.c.l.b16 %v198
    %v295 = vunpack.c.h.b16 %v198
    %v296 = vunpack.c.l.b16 %v199
    %v297 = vunpack.c.h.b16 %v199
    %v298 = vunpack.c.l.b16 %v200
    %v299 = vunpack.c.h.b16 %v200
    %v300 = vunpack.c.l.b16 %v201
    %v301 = vunpack.c.h.b16 %v201
    %v302 = vunpack.c.l.b16 %v202
    %v303 = vunpack.c.h.b16 %v202
    %v304 = vunpack.c.l.b16 %v203
    %v305 = vunpack.c.h.b16 %v203
    %v306 = vunpack.c.l.b16 %v204
    %v307 = vunpack.c.h.b16 %v204
    %v308 = vunpack.c.l.b16 %v205
    %v309 = vunpack.c.h.b16 %v205
    %v310 = vunpack.c.l.b16 %v206
    %v311 = vunpack.c.h.b16 %v206
    %v312 = vunpack.c.l.b16 %v207
    %v313 = vunpack.c.h.b16 %v207
    %v314 = vunpack.c.l.b16 %v208
    %v315 = vunpack.c.h.b16 %v208
    %v316 = vunpack.c.l.b16 %v209
    %v317 = vunpack.c.h.b16 %v209
    %v318 = vunpack.c.l.b16 %v210
    %v319 = vunpack.c.h.b16 %v210
    %v320 = vunpack.c.l.b16 %v211
    %v321 = vunpack.c.h.b16 %v211
    %v322 = vunpack.c.l.b16 %v212
    %v323 = vunpack.c.h.b16 %v212
    %v324 = vunpack.c.l.b16 %v213
    %v325 = vunpack.c.h.b16 %v213
    %v326 = vunpack.c.l.b16 %v214
    %v327 = vunpack.c.h.b16 %v214
    %v328 = vunpack.c.l.b16 %v215
    %v329 = vunpack.c.h.b16 %v215
    %v330 = vunpack.c.l.b16 %v216
    %v331 = vunpack.c.h.b16 %v216
    %v332 = vunpack.c.l.b16 %v217
    %v333 = vunpack.c.h.b16 %v217
    %v334 = vunpack.c.l.b16 %v218
    %v335 = vunpack.c.h.b16 %v218
    %v336 = vunpack.c.l.b16 %v219
    %v337 = vunpack.c.h.b16 %v219
    %v338 = vpack.c.b16 %v278, %v274
    %v339 = vpack.c.b16 %v279, %v275
    %v340 = vpack.c.b16 %v280, %v276
    %v341 = vpack.c.b16 %v281, %v277
    %v342 = vpack.c.b16 %v286, %v282
    %v343 = vpack.c.b16 %v287, %v283
    %v344 = vpack.c.b16 %v288, %v284
    %v345 = vpack.c.b16 %v289, %v285
    %v346 = vpack.c.b16 %v294, %v290
    %v347 = vpack.c.b16 %v295, %v291
    %v348 = vpack.c.b16 %v296, %v292
    %v349 = vpack.c.b16 %v297, %v293
    %v350 = vpack.c.b16 %v302, %v298
    %v351 = vpack.c.b16 %v303, %v299
    %v352 = vpack.c.b16 %v304, %v300
    %v353 = vpack.c.b16 %v305, %v301
    %v354 = vpack.c.b16 %v310, %v306
    %v355 = vpack.c.b16 %v311, %v307
    %v356 = vpack.c.b16 %v312, %v308
    %v357 = vpack.c.b16 %v313, %v309
    %v358 = vpack.c.b16 %v318, %v314
    %v359 = vpack.c.b16 %v319, %v315
    %v360 = vpack.c.b16 %v320, %v316
    %v361 = vpack.c.b16 %v321, %v317
    %v362 = vpack.c.b16 %v326, %v322
    %v363 = vpack.c.b16 %v327, %v323
    %v364 = vpack.c.b16 %v328, %v324
    %v365 = vpack.c.b16 %v329, %v325
    %v366 = vpack.c.b16 %v334, %v330
    %v367 = vpack.c.b16 %v335, %v331
    %v368 = vpack.c.b16 %v336, %v332
    %v369 = vpack.c.b16 %v337, %v333
    %402 = vmatprep.subr.bf16.mxu0 %v339
    %403 = vmatpush1.bf16.msra.mxu0 %v338
    %404 = vmatprep.subr.bf16.mxu0 %v343
    %405 = vmatpush1.bf16.msra.mxu0 %v342
    %406 = vmatprep.subr.bf16.mxu0 %v347
    %407 = vmatpush1.bf16.msra.mxu0 %v346
    %408 = vmatprep.subr.bf16.mxu0 %v351
    %409 = vmatpush1.bf16.msra.mxu0 %v350
    %410 = vmatprep.subr.bf16.mxu0 %v355
    %411 = vmatpush1.bf16.msra.mxu0 %v354
    %412 = vmatprep.subr.bf16.mxu0 %v359
    %413 = vmatpush1.bf16.msra.mxu0 %v358
    %414 = vmatprep.subr.bf16.mxu0 %v363
    %415 = vmatpush1.bf16.msra.mxu0 %v362
    %416 = vmatprep.subr.bf16.mxu0 %v367
    %417 = vmatpush1.bf16.msra.mxu0 %v366
    %418 = vmatprep.subr.bf16.mxu0 0
    %419 = vmatpush1.bf16.msra.mxu0 0
    %420 = vmatprep.subr.bf16.mxu0 0
    %421 = vmatpush1.bf16.msra.mxu0 0
    %422 = vmatprep.subr.bf16.mxu0 0
    %423 = vmatpush1.bf16.msra.mxu0 0
    %424 = vmatprep.subr.bf16.mxu0 0
    %425 = vmatpush1.bf16.msra.mxu0 0
    %426 = vmatprep.subr.bf16.mxu0 0
    %427 = vmatpush1.bf16.msra.mxu0 0
    %428 = vmatprep.subr.bf16.mxu0 0
    %429 = vmatpush1.bf16.msra.mxu0 0
    %430 = vmatprep.subr.bf16.mxu0 0
    %431 = vmatpush1.bf16.msra.mxu0 0
    %432 = vmatprep.subr.bf16.mxu0 0
    %433 = vmatpush1.bf16.msra.mxu0 0
    %434 = vmatprep.mubr.bf16.mxu0 0
    %435 = vmatmul.mubr.bf16.gmra.mrb[0].mxu0 %v187
    %v436 = vpop.f32.mrb[0].mxu0
    %v437 = vadd.f32 %v225, %v436
    %v438 = vpop.f32.mrb[0].mxu0
    %v439 = vadd.f32 %v229, %v438
    %v440 = vpop.f32.mrb[0].mxu0
    %v441 = vpop.f32.mrb[0].mxu0
    %442 = vdwg.mxu0
    %443 = vmatprep.subr.bf16.mxu0 %v341
    %444 = vmatpush1.bf16.msra.mxu0 %v340
    %445 = vmatprep.subr.bf16.mxu0 %v345
    %446 = vmatpush1.bf16.msra.mxu0 %v344
    %447 = vmatprep.subr.bf16.mxu0 %v349
    %448 = vmatpush1.bf16.msra.mxu0 %v348
    %449 = vmatprep.subr.bf16.mxu0 %v353
    %450 = vmatpush1.bf16.msra.mxu0 %v352
    %451 = vmatprep.subr.bf16.mxu0 %v357
    %452 = vmatpush1.bf16.msra.mxu0 %v356
    %453 = vmatprep.subr.bf16.mxu0 %v361
    %454 = vmatpush1.bf16.msra.mxu0 %v360
    %455 = vmatprep.subr.bf16.mxu0 %v365
    %456 = vmatpush1.bf16.msra.mxu0 %v364
    %457 = vmatprep.subr.bf16.mxu0 %v369
    %458 = vmatpush1.bf16.msra.mxu0 %v368
    %459 = vmatprep.subr.bf16.mxu0 0
    %460 = vmatpush1.bf16.msra.mxu0 0
    %461 = vmatprep.subr.bf16.mxu0 0
    %462 = vmatpush1.bf16.msra.mxu0 0
    %463 = vmatprep.subr.bf16.mxu0 0
    %464 = vmatpush1.bf16.msra.mxu0 0
    %465 = vmatprep.subr.bf16.mxu0 0
    %466 = vmatpush1.bf16.msra.mxu0 0
    %467 = vmatprep.subr.bf16.mxu0 0
    %468 = vmatpush1.bf16.msra.mxu0 0
    %469 = vmatprep.subr.bf16.mxu0 0
    %470 = vmatpush1.bf16.msra.mxu0 0
    %471 = vmatprep.subr.bf16.mxu0 0
    %472 = vmatpush1.bf16.msra.mxu0 0
    %473 = vmatprep.subr.bf16.mxu0 0
    %474 = vmatpush1.bf16.msra.mxu0 0
    %475 = vmatprep.mubr.bf16.mxu0 0
    %476 = vmatmul.mubr.bf16.gmra.mrb[0].mxu0 %v187
    %v477 = vpop.f32.mrb[0].mxu0
    %v478 = vadd.f32 %v233, %v477
    %v479 = vpop.f32.mrb[0].mxu0
    %v480 = vadd.f32 %v237, %v479
    %v481 = vpop.f32.mrb[0].mxu0
    %v482 = vpop.f32.mrb[0].mxu0
    %483 = vdwg.mxu0
    %v484 = vmax.f32 %v437, 0.0
    %v485 = vmax.f32 %v439, 0.0
    %v486 = vmax.f32 %v478, 0.0
    %v487 = vmax.f32 %v480, 0.0
    %v488 = vpack.c.bf16 %v484, %v484
    %v489 = vpack.c.bf16 %v485, %v485
    %v490 = vpack.c.bf16 %v486, %v486
    %v491 = vpack.c.bf16 %v487, %v487
    %v492 = vld [vmem:[#allocation10] sm:$0xff]
    %v493 = vld [vmem:[#allocation10 + $0x8] sm:$0xf]
    %v494 = vld [vmem:[#allocation10 + $0xc] sm:$0xff]
    %v495 = vld [vmem:[#allocation10 + $0x14] sm:$0xf]
    %v496 = vld [vmem:[#allocation10 + $0x18] sm:$0xff]
    %v497 = vld [vmem:[#allocation10 + $0x20] sm:$0xf]
    %v498 = vld [vmem:[#allocation10 + $0x24] sm:$0xff]
    %v499 = vld [vmem:[#allocation10 + $0x2c] sm:$0xf]
    %v500 = vld [vmem:[#allocation10 + $0x30] sm:$0xff]
    %v501 = vld [vmem:[#allocation10 + $0x38] sm:$0xf]
    %v502 = vld [vmem:[#allocation10 + $0x3c] sm:$0xff]
    %v503 = vld [vmem:[#allocation10 + $0x44] sm:$0xf]
    %v504 = vld [vmem:[#allocation10 + $0x48] sm:$0xff]
    %v505 = vld [vmem:[#allocation10 + $0x50] sm:$0xf]
    %v506 = vld [vmem:[#allocation10 + $0x54] sm:$0xff]
    %v507 = vld [vmem:[#allocation10 + $0x5c] sm:$0xf]
    %v508 = vld [vmem:[#allocation10 + $0x60] sm:$0xff]
    %v509 = vld [vmem:[#allocation10 + $0x68] sm:$0xf]
    %v510 = vld [vmem:[#allocation10 + $0x6c] sm:$0xff]
    %v511 = vld [vmem:[#allocation10 + $0x74] sm:$0xf]
    %v512 = vld [vmem:[#allocation10 + $0x78] sm:$0xff]
    %v513 = vld [vmem:[#allocation10 + $0x80] sm:$0xf]
    %v514 = vld [vmem:[#allocation10 + $0x84] sm:$0xff]
    %v515 = vld [vmem:[#allocation10 + $0x8c] sm:$0xf]
    %v516 = vld [vmem:[#allocation10 + $0x90] sm:$0xff]
    %v517 = vld [vmem:[#allocation10 + $0x98] sm:$0xf]
    %v518 = vld [vmem:[#allocation10 + $0x9c] sm:$0xff]
    %v519 = vld [vmem:[#allocation10 + $0xa4] sm:$0xf]
    %v520 = vld [vmem:[#allocation10 + $0xa8] sm:$0xff]
    %v521 = vld [vmem:[#allocation10 + $0xb0] sm:$0xf]
    %v522 = vld [vmem:[#allocation10 + $0xb4] sm:$0xff]
    %v523 = vld [vmem:[#allocation10 + $0xbc] sm:$0xf]
    %v524 = vld [vmem:[#allocation10 + $0xc0] sm:$0xff]
    %v525 = vld [vmem:[#allocation10 + $0xc8] sm:$0xf]
    %v526 = vld [vmem:[#allocation10 + $0xcc] sm:$0xff]
    %v527 = vld [vmem:[#allocation10 + $0xd4] sm:$0xf]
    %v528 = vld [vmem:[#allocation10 + $0xd8] sm:$0xff]
    %v529 = vld [vmem:[#allocation10 + $0xe0] sm:$0xf]
    %v530 = vld [vmem:[#allocation10 + $0xe4] sm:$0xff]
    %v531 = vld [vmem:[#allocation10 + $0xec] sm:$0xf]
    %v532 = vld [vmem:[#allocation10 + $0xf0] sm:$0xff]
    %v533 = vld [vmem:[#allocation10 + $0xf8] sm:$0xf]
    %v534 = vld [vmem:[#allocation10 + $0xfc] sm:$0xff]
    %v535 = vld [vmem:[#allocation10 + $0x104] sm:$0xf]
    %v536 = vld [vmem:[#allocation10 + $0x108] sm:$0xff]
    %v537 = vld [vmem:[#allocation10 + $0x110] sm:$0xf]
    %v538 = vld [vmem:[#allocation10 + $0x114] sm:$0xff]
    %v539 = vld [vmem:[#allocation10 + $0x11c] sm:$0xf]
    %v540 = vld [vmem:[#allocation10 + $0x120] sm:$0xff]
    %v541 = vld [vmem:[#allocation10 + $0x128] sm:$0xf]
    %v542 = vld [vmem:[#allocation10 + $0x12c] sm:$0xff]
    %v543 = vld [vmem:[#allocation10 + $0x134] sm:$0xf]
    %v544 = vld [vmem:[#allocation10 + $0x138] sm:$0xff]
    %v545 = vld [vmem:[#allocation10 + $0x140] sm:$0xf]
    %v546 = vld [vmem:[#allocation10 + $0x144] sm:$0xff]
    %v547 = vld [vmem:[#allocation10 + $0x14c] sm:$0xf]
    %v548 = vld [vmem:[#allocation10 + $0x150] sm:$0xff]
    %v549 = vld [vmem:[#allocation10 + $0x158] sm:$0xf]
    %v550 = vld [vmem:[#allocation10 + $0x15c] sm:$0xff]
    %v551 = vld [vmem:[#allocation10 + $0x164] sm:$0xf]
    %v552 = vld [vmem:[#allocation10 + $0x168] sm:$0xff]
    %v553 = vld [vmem:[#allocation10 + $0x170] sm:$0xf]
    %v554 = vld [vmem:[#allocation10 + $0x174] sm:$0xff]
    %v555 = vld [vmem:[#allocation10 + $0x17c] sm:$0xf]
    %v556 = vld [vmem:[#allocation10 + $0x180] sm:$0xff]
    %v557 = vld [vmem:[#allocation10 + $0x188] sm:$0xf]
    %v558 = vld [vmem:[#allocation10 + $0x18c] sm:$0xff]
    %v559 = vld [vmem:[#allocation10 + $0x194] sm:$0xf]
    %v560 = vld [vmem:[#allocation10 + $0x198] sm:$0xff]
    %v561 = vld [vmem:[#allocation10 + $0x1a0] sm:$0xf]
    %v562 = vld [vmem:[#allocation10 + $0x1a4] sm:$0xff]
    %v563 = vld [vmem:[#allocation10 + $0x1ac] sm:$0xf]
    %v564 = vld [vmem:[#allocation10 + $0x1b0] sm:$0xff]
    %v565 = vld [vmem:[#allocation10 + $0x1b8] sm:$0xf]
    %v566 = vld [vmem:[#allocation10 + $0x1bc] sm:$0xff]
    %v567 = vld [vmem:[#allocation10 + $0x1c4] sm:$0xf]
    %v568 = vld [vmem:[#allocation10 + $0x1c8] sm:$0xff]
    %v569 = vld [vmem:[#allocation10 + $0x1d0] sm:$0xf]
    %v570 = vld [vmem:[#allocation10 + $0x1d4] sm:$0xff]
    %v571 = vld [vmem:[#allocation10 + $0x1dc] sm:$0xf]
    %v572 = vld [vmem:[#allocation10 + $0x1e0] sm:$0xff]
    %v573 = vld [vmem:[#allocation10 + $0x1e8] sm:$0xf]
    %v574 = vld [vmem:[#allocation10 + $0x1ec] sm:$0xff]
    %v575 = vld [vmem:[#allocation10 + $0x1f4] sm:$0xf]
    %v576 = vld [vmem:[#allocation10 + $0x1f8] sm:$0xff]
    %v577 = vld [vmem:[#allocation10 + $0x200] sm:$0xf]
    %v578 = vld [vmem:[#allocation10 + $0x204] sm:$0xff]
    %v579 = vld [vmem:[#allocation10 + $0x20c] sm:$0xf]
    %v580 = vld [vmem:[#allocation10 + $0x210] sm:$0xff]
    %v581 = vld [vmem:[#allocation10 + $0x218] sm:$0xf]
    %v582 = vld [vmem:[#allocation10 + $0x21c] sm:$0xff]
    %v583 = vld [vmem:[#allocation10 + $0x224] sm:$0xf]
    %v584 = vld [vmem:[#allocation10 + $0x228] sm:$0xff]
    %v585 = vld [vmem:[#allocation10 + $0x230] sm:$0xf]
    %v586 = vld [vmem:[#allocation10 + $0x234] sm:$0xff]
    %v587 = vld [vmem:[#allocation10 + $0x23c] sm:$0xf]
    %v588 = vld [vmem:[#allocation10 + $0x240] sm:$0xff]
    %v589 = vld [vmem:[#allocation10 + $0x248] sm:$0xf]
    %v590 = vld [vmem:[#allocation10 + $0x24c] sm:$0xff]
    %v591 = vld [vmem:[#allocation10 + $0x254] sm:$0xf]
    %v592 = vld [vmem:[#allocation10 + $0x258] sm:$0xff]
    %v593 = vld [vmem:[#allocation10 + $0x260] sm:$0xf]
    %v594 = vld [vmem:[#allocation10 + $0x264] sm:$0xff]
    %v595 = vld [vmem:[#allocation10 + $0x26c] sm:$0xf]
    %v596 = vld [vmem:[#allocation10 + $0x270] sm:$0xff]
    %v597 = vld [vmem:[#allocation10 + $0x278] sm:$0xf]
    %v598 = vld [vmem:[#allocation10 + $0x27c] sm:$0xff]
    %v599 = vld [vmem:[#allocation10 + $0x284] sm:$0xf]
    %v600 = vld [vmem:[#allocation10 + $0x288] sm:$0xff]
    %v601 = vld [vmem:[#allocation10 + $0x290] sm:$0xf]
    %v602 = vld [vmem:[#allocation10 + $0x294] sm:$0xff]
    %v603 = vld [vmem:[#allocation10 + $0x29c] sm:$0xf]
    %v604 = vld [vmem:[#allocation10 + $0x2a0] sm:$0xff]
    %v605 = vld [vmem:[#allocation10 + $0x2a8] sm:$0xf]
    %v606 = vld [vmem:[#allocation10 + $0x2ac] sm:$0xff]
    %v607 = vld [vmem:[#allocation10 + $0x2b4] sm:$0xf]
    %v608 = vld [vmem:[#allocation10 + $0x2b8] sm:$0xff]
    %v609 = vld [vmem:[#allocation10 + $0x2c0] sm:$0xf]
    %v610 = vld [vmem:[#allocation10 + $0x2c4] sm:$0xff]
    %v611 = vld [vmem:[#allocation10 + $0x2cc] sm:$0xf]
    %v612 = vld [vmem:[#allocation10 + $0x2d0] sm:$0xff]
    %v613 = vld [vmem:[#allocation10 + $0x2d8] sm:$0xf]
    %v614 = vld [vmem:[#allocation10 + $0x2dc] sm:$0xff]
    %v615 = vld [vmem:[#allocation10 + $0x2e4] sm:$0xf]
    %v616 = vld [vmem:[#allocation10 + $0x2e8] sm:$0xff]
    %v617 = vld [vmem:[#allocation10 + $0x2f0] sm:$0xf]
    %v618 = vld [vmem:[#allocation10 + $0x2f4] sm:$0xff]
    %v619 = vld [vmem:[#allocation10 + $0x2fc] sm:$0xf]
    %v620 = vld [vmem:[%s6] sm:$0x7]
    %v622 = vlaneseq
    %v623 = vshrl.u32 %v622, 7
    %v624 = vsub.s32 0, %v623
    %v625 = vrot.slane %v620, %v624
    %v626 = vlaneseq
    %v627 = vshrl.u32 %v626, 7
    %v628 = vsub.s32 1, %v627
    %v629 = vrot.slane %v620, %v628
    %v630 = vlaneseq
    %v631 = vshrl.u32 %v630, 7
    %v632 = vsub.s32 2, %v631
    %v633 = vrot.slane %v620, %v632
    %v765 = vunpack.c.l.b16 %v492
    %v766 = vunpack.c.h.b16 %v492
    %v767 = vunpack.c.l.b16 %v493
    %v768 = vunpack.c.l.b16 %v494
    %v769 = vunpack.c.h.b16 %v494
    %v770 = vunpack.c.l.b16 %v495
    %v771 = vunpack.c.l.b16 %v496
    %v772 = vunpack.c.h.b16 %v496
    %v773 = vunpack.c.l.b16 %v497
    %v774 = vunpack.c.l.b16 %v498
    %v775 = vunpack.c.h.b16 %v498
    %v776 = vunpack.c.l.b16 %v499
    %v777 = vunpack.c.l.b16 %v500
    %v778 = vunpack.c.h.b16 %v500
    %v779 = vunpack.c.l.b16 %v501
    %v780 = vunpack.c.l.b16 %v502
    %v781 = vunpack.c.h.b16 %v502
    %v782 = vunpack.c.l.b16 %v503
    %v783 = vunpack.c.l.b16 %v504
    %v784 = vunpack.c.h.b16 %v504
    %v785 = vunpack.c.l.b16 %v505
    %v786 = vunpack.c.l.b16 %v506
    %v787 = vunpack.c.h.b16 %v506
    %v788 = vunpack.c.l.b16 %v507
    %v789 = vunpack.c.l.b16 %v508
    %v790 = vunpack.c.h.b16 %v508
    %v791 = vunpack.c.l.b16 %v509
    %v792 = vunpack.c.l.b16 %v510
    %v793 = vunpack.c.h.b16 %v510
    %v794 = vunpack.c.l.b16 %v511
    %v795 = vunpack.c.l.b16 %v512
    %v796 = vunpack.c.h.b16 %v512
    %v797 = vunpack.c.l.b16 %v513
    %v798 = vunpack.c.l.b16 %v514
    %v799 = vunpack.c.h.b16 %v514
    %v800 = vunpack.c.l.b16 %v515
    %v801 = vunpack.c.l.b16 %v516
    %v802 = vunpack.c.h.b16 %v516
    %v803 = vunpack.c.l.b16 %v517
    %v804 = vunpack.c.l.b16 %v518
    %v805 = vunpack.c.h.b16 %v518
    %v806 = vunpack.c.l.b16 %v519
    %v807 = vunpack.c.l.b16 %v520
    %v808 = vunpack.c.h.b16 %v520
    %v809 = vunpack.c.l.b16 %v521
    %v810 = vunpack.c.l.b16 %v522
    %v811 = vunpack.c.h.b16 %v522
    %v812 = vunpack.c.l.b16 %v523
    %v813 = vunpack.c.l.b16 %v524
    %v814 = vunpack.c.h.b16 %v524
    %v815 = vunpack.c.l.b16 %v525
    %v816 = vunpack.c.l.b16 %v526
    %v817 = vunpack.c.h.b16 %v526
    %v818 = vunpack.c.l.b16 %v527
    %v819 = vunpack.c.l.b16 %v528
    %v820 = vunpack.c.h.b16 %v528
    %v821 = vunpack.c.l.b16 %v529
    %v822 = vunpack.c.l.b16 %v530
    %v823 = vunpack.c.h.b16 %v530
    %v824 = vunpack.c.l.b16 %v531
    %v825 = vunpack.c.l.b16 %v532
    %v826 = vunpack.c.h.b16 %v532
    %v827 = vunpack.c.l.b16 %v533
    %v828 = vunpack.c.l.b16 %v534
    %v829 = vunpack.c.h.b16 %v534
    %v830 = vunpack.c.l.b16 %v535
    %v831 = vunpack.c.l.b16 %v536
    %v832 = vunpack.c.h.b16 %v536
    %v833 = vunpack.c.l.b16 %v537
    %v834 = vunpack.c.l.b16 %v538
    %v835 = vunpack.c.h.b16 %v538
    %v836 = vunpack.c.l.b16 %v539
    %v837 = vunpack.c.l.b16 %v540
    %v838 = vunpack.c.h.b16 %v540
    %v839 = vunpack.c.l.b16 %v541
    %v840 = vunpack.c.l.b16 %v542
    %v841 = vunpack.c.h.b16 %v542
    %v842 = vunpack.c.l.b16 %v543
    %v843 = vunpack.c.l.b16 %v544
    %v844 = vunpack.c.h.b16 %v544
    %v845 = vunpack.c.l.b16 %v545
    %v846 = vunpack.c.l.b16 %v546
    %v847 = vunpack.c.h.b16 %v546
    %v848 = vunpack.c.l.b16 %v547
    %v849 = vunpack.c.l.b16 %v548
    %v850 = vunpack.c.h.b16 %v548
    %v851 = vunpack.c.l.b16 %v549
    %v852 = vunpack.c.l.b16 %v550
    %v853 = vunpack.c.h.b16 %v550
    %v854 = vunpack.c.l.b16 %v551
    %v855 = vunpack.c.l.b16 %v552
    %v856 = vunpack.c.h.b16 %v552
    %v857 = vunpack.c.l.b16 %v553
    %v858 = vunpack.c.l.b16 %v554
    %v859 = vunpack.c.h.b16 %v554
    %v860 = vunpack.c.l.b16 %v555
    %v861 = vunpack.c.l.b16 %v556
    %v862 = vunpack.c.h.b16 %v556
    %v863 = vunpack.c.l.b16 %v557
    %v864 = vunpack.c.l.b16 %v558
    %v865 = vunpack.c.h.b16 %v558
    %v866 = vunpack.c.l.b16 %v559
    %v867 = vunpack.c.l.b16 %v560
    %v868 = vunpack.c.h.b16 %v560
    %v869 = vunpack.c.l.b16 %v561
    %v870 = vunpack.c.l.b16 %v562
    %v871 = vunpack.c.h.b16 %v562
    %v872 = vunpack.c.l.b16 %v563
    %v873 = vunpack.c.l.b16 %v564
    %v874 = vunpack.c.h.b16 %v564
    %v875 = vunpack.c.l.b16 %v565
    %v876 = vunpack.c.l.b16 %v566
    %v877 = vunpack.c.h.b16 %v566
    %v878 = vunpack.c.l.b16 %v567
    %v879 = vunpack.c.l.b16 %v568
    %v880 = vunpack.c.h.b16 %v568
    %v881 = vunpack.c.l.b16 %v569
    %v882 = vunpack.c.l.b16 %v570
    %v883 = vunpack.c.h.b16 %v570
    %v884 = vunpack.c.l.b16 %v571
    %v885 = vunpack.c.l.b16 %v572
    %v886 = vunpack.c.h.b16 %v572
    %v887 = vunpack.c.l.b16 %v573
    %v888 = vunpack.c.l.b16 %v574
    %v889 = vunpack.c.h.b16 %v574
    %v890 = vunpack.c.l.b16 %v575
    %v891 = vunpack.c.l.b16 %v576
    %v892 = vunpack.c.h.b16 %v576
    %v893 = vunpack.c.l.b16 %v577
    %v894 = vunpack.c.l.b16 %v578
    %v895 = vunpack.c.h.b16 %v578
    %v896 = vunpack.c.l.b16 %v579
    %v897 = vunpack.c.l.b16 %v580
    %v898 = vunpack.c.h.b16 %v580
    %v899 = vunpack.c.l.b16 %v581
    %v900 = vunpack.c.l.b16 %v582
    %v901 = vunpack.c.h.b16 %v582
    %v902 = vunpack.c.l.b16 %v583
    %v903 = vunpack.c.l.b16 %v584
    %v904 = vunpack.c.h.b16 %v584
    %v905 = vunpack.c.l.b16 %v585
    %v906 = vunpack.c.l.b16 %v586
    %v907 = vunpack.c.h.b16 %v586
    %v908 = vunpack.c.l.b16 %v587
    %v909 = vunpack.c.l.b16 %v588
    %v910 = vunpack.c.h.b16 %v588
    %v911 = vunpack.c.l.b16 %v589
    %v912 = vunpack.c.l.b16 %v590
    %v913 = vunpack.c.h.b16 %v590
    %v914 = vunpack.c.l.b16 %v591
    %v915 = vunpack.c.l.b16 %v592
    %v916 = vunpack.c.h.b16 %v592
    %v917 = vunpack.c.l.b16 %v593
    %v918 = vunpack.c.l.b16 %v594
    %v919 = vunpack.c.h.b16 %v594
    %v920 = vunpack.c.l.b16 %v595
    %v921 = vunpack.c.l.b16 %v596
    %v922 = vunpack.c.h.b16 %v596
    %v923 = vunpack.c.l.b16 %v597
    %v924 = vunpack.c.l.b16 %v598
    %v925 = vunpack.c.h.b16 %v598
    %v926 = vunpack.c.l.b16 %v599
    %v927 = vunpack.c.l.b16 %v600
    %v928 = vunpack.c.h.b16 %v600
    %v929 = vunpack.c.l.b16 %v601
    %v930 = vunpack.c.l.b16 %v602
    %v931 = vunpack.c.h.b16 %v602
    %v932 = vunpack.c.l.b16 %v603
    %v933 = vunpack.c.l.b16 %v604
    %v934 = vunpack.c.h.b16 %v604
    %v935 = vunpack.c.l.b16 %v605
    %v936 = vunpack.c.l.b16 %v606
    %v937 = vunpack.c.h.b16 %v606
    %v938 = vunpack.c.l.b16 %v607
    %v939 = vunpack.c.l.b16 %v608
    %v940 = vunpack.c.h.b16 %v608
    %v941 = vunpack.c.l.b16 %v609
    %v942 = vunpack.c.l.b16 %v610
    %v943 = vunpack.c.h.b16 %v610
    %v944 = vunpack.c.l.b16 %v611
    %v945 = vunpack.c.l.b16 %v612
    %v946 = vunpack.c.h.b16 %v612
    %v947 = vunpack.c.l.b16 %v613
    %v948 = vunpack.c.l.b16 %v614
    %v949 = vunpack.c.h.b16 %v614
    %v950 = vunpack.c.l.b16 %v615
    %v951 = vunpack.c.l.b16 %v616
    %v952 = vunpack.c.h.b16 %v616
    %v953 = vunpack.c.l.b16 %v617
    %v954 = vunpack.c.l.b16 %v618
    %v955 = vunpack.c.h.b16 %v618
    %v956 = vunpack.c.l.b16 %v619
    %v957 = vpack.c.b16 %v768, %v765
    %v958 = vpack.c.b16 %v769, %v766
    %v959 = vpack.c.b16 %v770, %v767
    %v960 = vpack.c.b16 %v774, %v771
    %v961 = vpack.c.b16 %v775, %v772
    %v962 = vpack.c.b16 %v776, %v773
    %v963 = vpack.c.b16 %v780, %v777
    %v964 = vpack.c.b16 %v781, %v778
    %v965 = vpack.c.b16 %v782, %v779
    %v966 = vpack.c.b16 %v786, %v783
    %v967 = vpack.c.b16 %v787, %v784
    %v968 = vpack.c.b16 %v788, %v785
    %v969 = vpack.c.b16 %v792, %v789
    %v970 = vpack.c.b16 %v793, %v790
    %v971 = vpack.c.b16 %v794, %v791
    %v972 = vpack.c.b16 %v798, %v795
    %v973 = vpack.c.b16 %v799, %v796
    %v974 = vpack.c.b16 %v800, %v797
    %v975 = vpack.c.b16 %v804, %v801
    %v976 = vpack.c.b16 %v805, %v802
    %v977 = vpack.c.b16 %v806, %v803
    %v978 = vpack.c.b16 %v810, %v807
    %v979 = vpack.c.b16 %v811, %v808
    %v980 = vpack.c.b16 %v812, %v809
    %v981 = vpack.c.b16 %v816, %v813
    %v982 = vpack.c.b16 %v817, %v814
    %v983 = vpack.c.b16 %v818, %v815
    %v984 = vpack.c.b16 %v822, %v819
    %v985 = vpack.c.b16 %v823, %v820
    %v986 = vpack.c.b16 %v824, %v821
    %v987 = vpack.c.b16 %v828, %v825
    %v988 = vpack.c.b16 %v829, %v826
    %v989 = vpack.c.b16 %v830, %v827
    %v990 = vpack.c.b16 %v834, %v831
    %v991 = vpack.c.b16 %v835, %v832
    %v992 = vpack.c.b16 %v836, %v833
    %v993 = vpack.c.b16 %v840, %v837
    %v994 = vpack.c.b16 %v841, %v838
    %v995 = vpack.c.b16 %v842, %v839
    %v996 = vpack.c.b16 %v846, %v843
    %v997 = vpack.c.b16 %v847, %v844
    %v998 = vpack.c.b16 %v848, %v845
    %v999 = vpack.c.b16 %v852, %v849
    %v1000 = vpack.c.b16 %v853, %v850
    %v1001 = vpack.c.b16 %v854, %v851
    %v1002 = vpack.c.b16 %v858, %v855
    %v1003 = vpack.c.b16 %v859, %v856
    %v1004 = vpack.c.b16 %v860, %v857
    %v1005 = vpack.c.b16 %v864, %v861
    %v1006 = vpack.c.b16 %v865, %v862
    %v1007 = vpack.c.b16 %v866, %v863
    %v1008 = vpack.c.b16 %v870, %v867
    %v1009 = vpack.c.b16 %v871, %v868
    %v1010 = vpack.c.b16 %v872, %v869
    %v1011 = vpack.c.b16 %v876, %v873
    %v1012 = vpack.c.b16 %v877, %v874
    %v1013 = vpack.c.b16 %v878, %v875
    %v1014 = vpack.c.b16 %v882, %v879
    %v1015 = vpack.c.b16 %v883, %v880
    %v1016 = vpack.c.b16 %v884, %v881
    %v1017 = vpack.c.b16 %v888, %v885
    %v1018 = vpack.c.b16 %v889, %v886
    %v1019 = vpack.c.b16 %v890, %v887
    %v1020 = vpack.c.b16 %v894, %v891
    %v1021 = vpack.c.b16 %v895, %v892
    %v1022 = vpack.c.b16 %v896, %v893
    %v1023 = vpack.c.b16 %v900, %v897
    %v1024 = vpack.c.b16 %v901, %v898
    %v1025 = vpack.c.b16 %v902, %v899
    %v1026 = vpack.c.b16 %v906, %v903
    %v1027 = vpack.c.b16 %v907, %v904
    %v1028 = vpack.c.b16 %v908, %v905
    %v1029 = vpack.c.b16 %v912, %v909
    %v1030 = vpack.c.b16 %v913, %v910
    %v1031 = vpack.c.b16 %v914, %v911
    %v1032 = vpack.c.b16 %v918, %v915
    %v1033 = vpack.c.b16 %v919, %v916
    %v1034 = vpack.c.b16 %v920, %v917
    %v1035 = vpack.c.b16 %v924, %v921
    %v1036 = vpack.c.b16 %v925, %v922
    %v1037 = vpack.c.b16 %v926, %v923
    %v1038 = vpack.c.b16 %v930, %v927
    %v1039 = vpack.c.b16 %v931, %v928
    %v1040 = vpack.c.b16 %v932, %v929
    %v1041 = vpack.c.b16 %v936, %v933
    %v1042 = vpack.c.b16 %v937, %v934
    %v1043 = vpack.c.b16 %v938, %v935
    %v1044 = vpack.c.b16 %v942, %v939
    %v1045 = vpack.c.b16 %v943, %v940
    %v1046 = vpack.c.b16 %v944, %v941
    %v1047 = vpack.c.b16 %v948, %v945
    %v1048 = vpack.c.b16 %v949, %v946
    %v1049 = vpack.c.b16 %v950, %v947
    %v1050 = vpack.c.b16 %v954, %v951
    %v1051 = vpack.c.b16 %v955, %v952
    %v1052 = vpack.c.b16 %v956, %v953
    %1149 = vmatprep.subr.bf16.mxu0 %v958
    %1150 = vmatpush1.bf16.msra.mxu0 %v957
    %1151 = vmatprep.subr.bf16.mxu0 %v961
    %1152 = vmatpush1.bf16.msra.mxu0 %v960
    %1153 = vmatprep.subr.bf16.mxu0 %v964
    %1154 = vmatpush1.bf16.msra.mxu0 %v963
    %1155 = vmatprep.subr.bf16.mxu0 %v967
    %1156 = vmatpush1.bf16.msra.mxu0 %v966
    %1157 = vmatprep.subr.bf16.mxu0 %v970
    %1158 = vmatpush1.bf16.msra.mxu0 %v969
    %1159 = vmatprep.subr.bf16.mxu0 %v973
    %1160 = vmatpush1.bf16.msra.mxu0 %v972
    %1161 = vmatprep.subr.bf16.mxu0 %v976
    %1162 = vmatpush1.bf16.msra.mxu0 %v975
    %1163 = vmatprep.subr.bf16.mxu0 %v979
    %1164 = vmatpush1.bf16.msra.mxu0 %v978
    %1165 = vmatprep.subr.bf16.mxu0 %v982
    %1166 = vmatpush1.bf16.msra.mxu0 %v981
    %1167 = vmatprep.subr.bf16.mxu0 %v985
    %1168 = vmatpush1.bf16.msra.mxu0 %v984
    %1169 = vmatprep.subr.bf16.mxu0 %v988
    %1170 = vmatpush1.bf16.msra.mxu0 %v987
    %1171 = vmatprep.subr.bf16.mxu0 %v991
    %1172 = vmatpush1.bf16.msra.mxu0 %v990
    %1173 = vmatprep.subr.bf16.mxu0 %v994
    %1174 = vmatpush1.bf16.msra.mxu0 %v993
    %1175 = vmatprep.subr.bf16.mxu0 %v997
    %1176 = vmatpush1.bf16.msra.mxu0 %v996
    %1177 = vmatprep.subr.bf16.mxu0 %v1000
    %1178 = vmatpush1.bf16.msra.mxu0 %v999
    %1179 = vmatprep.subr.bf16.mxu0 %v1003
    %1180 = vmatpush1.bf16.msra.mxu0 %v1002
    %1181 = vmatprep.mubr.bf16.mxu0 %v489
    %1182 = vmatmul.mubr.bf16.gmra.mrb[0].mxu0 %v488
    %v1183 = vpop.f32.mrb[0].mxu0
    %v1184 = vadd.f32 %v625, %v1183
    %v1185 = vpop.f32.mrb[0].mxu0
    %v1186 = vadd.f32 %v629, %v1185
    %v1187 = vpop.f32.mrb[0].mxu0
    %v1188 = vpop.f32.mrb[0].mxu0
    %1189 = vdwg.mxu0
    %1190 = vmatprep.subr.bf16.mxu0 %v1006
    %1191 = vmatpush1.bf16.msra.mxu0 %v1005
    %1192 = vmatprep.subr.bf16.mxu0 %v1009
    %1193 = vmatpush1.bf16.msra.mxu0 %v1008
    %1194 = vmatprep.subr.bf16.mxu0 %v1012
    %1195 = vmatpush1.bf16.msra.mxu0 %v1011
    %1196 = vmatprep.subr.bf16.mxu0 %v1015
    %1197 = vmatpush1.bf16.msra.mxu0 %v1014
    %1198 = vmatprep.subr.bf16.mxu0 %v1018
    %1199 = vmatpush1.bf16.msra.mxu0 %v1017
    %1200 = vmatprep.subr.bf16.mxu0 %v1021
    %1201 = vmatpush1.bf16.msra.mxu0 %v1020
    %1202 = vmatprep.subr.bf16.mxu0 %v1024
    %1203 = vmatpush1.bf16.msra.mxu0 %v1023
    %1204 = vmatprep.subr.bf16.mxu0 %v1027
    %1205 = vmatpush1.bf16.msra.mxu0 %v1026
    %1206 = vmatprep.subr.bf16.mxu0 %v1030
    %1207 = vmatpush1.bf16.msra.mxu0 %v1029
    %1208 = vmatprep.subr.bf16.mxu0 %v1033
    %1209 = vmatpush1.bf16.msra.mxu0 %v1032
    %1210 = vmatprep.subr.bf16.mxu0 %v1036
    %1211 = vmatpush1.bf16.msra.mxu0 %v1035
    %1212 = vmatprep.subr.bf16.mxu0 %v1039
    %1213 = vmatpush1.bf16.msra.mxu0 %v1038
    %1214 = vmatprep.subr.bf16.mxu0 %v1042
    %1215 = vmatpush1.bf16.msra.mxu0 %v1041
    %1216 = vmatprep.subr.bf16.mxu0 %v1045
    %1217 = vmatpush1.bf16.msra.mxu0 %v1044
    %1218 = vmatprep.subr.bf16.mxu0 %v1048
    %1219 = vmatpush1.bf16.msra.mxu0 %v1047
    %1220 = vmatprep.subr.bf16.mxu0 %v1051
    %1221 = vmatpush1.bf16.msra.mxu0 %v1050
    %1222 = vmatprep.mubr.bf16.mxu0 %v491
    %1223 = vmatmul.mubr.bf16.gmra.mrb[0].mxu0 %v490
    %v1224 = vpop.f32.mrb[0].mxu0
    %v1225 = vadd.f32 %v1184, %v1224
    %v1226 = vpop.f32.mrb[0].mxu0
    %v1227 = vadd.f32 %v1186, %v1226
    %v1228 = vpop.f32.mrb[0].mxu0
    %v1229 = vpop.f32.mrb[0].mxu0
    %1230 = vdwg.mxu0
    %1231 = vmatprep.subr.bf16.mxu0 0
    %1232 = vmatpush1.bf16.msra.mxu0 %v959
    %1233 = vmatprep.subr.bf16.mxu0 0
    %1234 = vmatpush1.bf16.msra.mxu0 %v962
    %1235 = vmatprep.subr.bf16.mxu0 0
    %1236 = vmatpush1.bf16.msra.mxu0 %v965
    %1237 = vmatprep.subr.bf16.mxu0 0
    %1238 = vmatpush1.bf16.msra.mxu0 %v968
    %1239 = vmatprep.subr.bf16.mxu0 0
    %1240 = vmatpush1.bf16.msra.mxu0 %v971
    %1241 = vmatprep.subr.bf16.mxu0 0
    %1242 = vmatpush1.bf16.msra.mxu0 %v974
    %1243 = vmatprep.subr.bf16.mxu0 0
    %1244 = vmatpush1.bf16.msra.mxu0 %v977
    %1245 = vmatprep.subr.bf16.mxu0 0
    %1246 = vmatpush1.bf16.msra.mxu0 %v980
    %1247 = vmatprep.subr.bf16.mxu0 0
    %1248 = vmatpush1.bf16.msra.mxu0 %v983
    %1249 = vmatprep.subr.bf16.mxu0 0
    %1250 = vmatpush1.bf16.msra.mxu0 %v986
    %1251 = vmatprep.subr.bf16.mxu0 0
    %1252 = vmatpush1.bf16.msra.mxu0 %v989
    %1253 = vmatprep.subr.bf16.mxu0 0
    %1254 = vmatpush1.bf16.msra.mxu0 %v992
    %1255 = vmatprep.subr.bf16.mxu0 0
    %1256 = vmatpush1.bf16.msra.mxu0 %v995
    %1257 = vmatprep.subr.bf16.mxu0 0
    %1258 = vmatpush1.bf16.msra.mxu0 %v998
    %1259 = vmatprep.subr.bf16.mxu0 0
    %1260 = vmatpush1.bf16.msra.mxu0 %v1001
    %1261 = vmatprep.subr.bf16.mxu0 0
    %1262 = vmatpush1.bf16.msra.mxu0 %v1004
    %1263 = vmatprep.mubr.bf16.mxu0 %v489
    %1264 = vmatmul.mubr.bf16.gmra.mrb[0].mxu0 %v488
    %v1265 = vpop.f32.mrb[0].mxu0
    %v1266 = vadd.f32 %v633, %v1265
    %v1267 = vpop.f32.mrb[0].mxu0
    %v1268 = vpop.f32.mrb[0].mxu0
    %v1269 = vpop.f32.mrb[0].mxu0
    %1270 = vdwg.mxu0
    %1271 = vmatprep.subr.bf16.mxu0 0
    %1272 = vmatpush1.bf16.msra.mxu0 %v1007
    %1273 = vmatprep.subr.bf16.mxu0 0
    %1274 = vmatpush1.bf16.msra.mxu0 %v1010
    %1275 = vmatprep.subr.bf16.mxu0 0
    %1276 = vmatpush1.bf16.msra.mxu0 %v1013
    %1277 = vmatprep.subr.bf16.mxu0 0
    %1278 = vmatpush1.bf16.msra.mxu0 %v1016
    %1279 = vmatprep.subr.bf16.mxu0 0
    %1280 = vmatpush1.bf16.msra.mxu0 %v1019
    %1281 = vmatprep.subr.bf16.mxu0 0
    %1282 = vmatpush1.bf16.msra.mxu0 %v1022
    %1283 = vmatprep.subr.bf16.mxu0 0
    %1284 = vmatpush1.bf16.msra.mxu0 %v1025
    %1285 = vmatprep.subr.bf16.mxu0 0
    %1286 = vmatpush1.bf16.msra.mxu0 %v1028
    %1287 = vmatprep.subr.bf16.mxu0 0
    %1288 = vmatpush1.bf16.msra.mxu0 %v1031
    %1289 = vmatprep.subr.bf16.mxu0 0
    %1290 = vmatpush1.bf16.msra.mxu0 %v1034
    %1291 = vmatprep.subr.bf16.mxu0 0
    %1292 = vmatpush1.bf16.msra.mxu0 %v1037
    %1293 = vmatprep.subr.bf16.mxu0 0
    %1294 = vmatpush1.bf16.msra.mxu0 %v1040
    %1295 = vmatprep.subr.bf16.mxu0 0
    %1296 = vmatpush1.bf16.msra.mxu0 %v1043
    %1297 = vmatprep.subr.bf16.mxu0 0
    %1298 = vmatpush1.bf16.msra.mxu0 %v1046
    %1299 = vmatprep.subr.bf16.mxu0 0
    %1300 = vmatpush1.bf16.msra.mxu0 %v1049
    %1301 = vmatprep.subr.bf16.mxu0 0
    %1302 = vmatpush1.bf16.msra.mxu0 %v1052
    %1303 = vmatprep.mubr.bf16.mxu0 %v491
    %1304 = vmatmul.mubr.bf16.gmra.mrb[0].mxu0 %v490
    %v1305 = vpop.f32.mrb[0].mxu0
    %v1306 = vadd.f32 %v1266, %v1305
    %v1307 = vpop.f32.mrb[0].mxu0
    %v1308 = vpop.f32.mrb[0].mxu0
    %v1309 = vpop.f32.mrb[0].mxu0
    %1310 = vdwg.mxu0
    %v1311 = vld [vmem:[%s7] sm:$0x7]
    %v1312 = vld [vmem:[%s8] sm:$0x7]
    %v1313 = vrot.slane %v1225, 4
    %v1314 = vadd.f32 %v1225, %v1313
    %v1315 = vrot.slane %v1314, 2
    %v1316 = vadd.f32 %v1314, %v1315
    %v1317 = vrot.slane %v1316, 1
    %v1318 = vadd.f32 %v1316, %v1317
    %v1319 = vrot.slane %v1227, 4
    %v1320 = vadd.f32 %v1227, %v1319
    %v1321 = vrot.slane %v1320, 2
    %v1322 = vadd.f32 %v1320, %v1321
    %v1323 = vrot.slane %v1322, 1
    %v1324 = vadd.f32 %v1322, %v1323
    %v1325 = vrot.slane %v1306, 4
    %v1326 = vadd.f32 %v1306, %v1325
    %v1327 = vrot.slane %v1326, 2
    %v1328 = vadd.f32 %v1326, %v1327
    %v1329 = vrot.slane %v1328, 1
    %v1330 = vadd.f32 %v1328, %v1329
    %v1331 = vmul.f32 %v1225, %v1225
    %v1332 = vmul.f32 %v1227, %v1227
    %v1333 = vmul.f32 %v1306, %v1306
    %v1334 = vrot.slane %v1331, 4
    %v1335 = vadd.f32 %v1331, %v1334
    %v1336 = vrot.slane %v1335, 2
    %v1337 = vadd.f32 %v1335, %v1336
    %v1338 = vrot.slane %v1337, 1
    %v1339 = vadd.f32 %v1337, %v1338
    %v1340 = vrot.slane %v1332, 4
    %v1341 = vadd.f32 %v1332, %v1340
    %v1342 = vrot.slane %v1341, 2
    %v1343 = vadd.f32 %v1341, %v1342
    %v1344 = vrot.slane %v1343, 1
    %v1345 = vadd.f32 %v1343, %v1344
    %v1346 = vrot.slane %v1333, 4
    %v1347 = vadd.f32 %v1333, %v1346
    %v1348 = vrot.slane %v1347, 2
    %v1349 = vadd.f32 %v1347, %v1348
    %v1350 = vrot.slane %v1349, 1
    %v1351 = vadd.f32 %v1349, %v1350
    %v1352 = vmul.f32 %v1318, 0.125
    %v1353 = vmul.f32 %v1324, 0.125
    %v1354 = vmul.f32 %v1330, 0.125
    %v1355 = vmul.f32 %v1339, 0.125
    %v1356 = vmul.f32 %v1345, 0.125
    %v1357 = vmul.f32 %v1351, 0.125
    %v1358 = vmul.f32 %v1352, %v1352
    %v1359 = vmul.f32 %v1353, %v1353
    %v1360 = vmul.f32 %v1354, %v1354
    %v1361 = vsub.f32 %v1355, %v1358
    %v1362 = vsub.f32 %v1356, %v1359
    %v1363 = vsub.f32 %v1357, %v1360
    %v1364 = vmax.f32 %v1361, 0.0
    %v1365 = vmax.f32 %v1362, 0.0
    %v1366 = vmax.f32 %v1363, 0.0
    %v1367 = vadd.f32 %v1364, 1e-05
    %v1368 = vadd.f32 %v1365, 1e-05
    %v1369 = vadd.f32 %v1366, 1e-05
    %v1370 = vrsqrt.pop %v1367
    %v1371 = vrsqrt.pop %v1368
    %v1372 = vrsqrt.pop %v1369
    %v1376 = vcombine.low %v1370, %v1371
    %v1378 = vunpack.c.l.s4 1966171168
    %v1379 = vunpack.c.0.s8 %v1378
    %v1380 = vlaneseq
    %v1381 = vshrl.u32 %v1380, 7
    %v1382 = vsub.s32 %v1379, %v1381
    %v1383 = vrot.slane %v1376, %v1382
    %v1385 = vunpack.c.l.s4 1966171168
    %v1386 = vunpack.c.0.s8 %v1385
    %v1387 = vlaneseq
    %v1388 = vshrl.u32 %v1387, 7
    %v1389 = vsub.s32 %v1386, %v1388
    %v1390 = vrot.slane %v1372, %v1389
    %v1391 = vcombine.low %v1383, %v1390
    %v1393 = vunpack.c.l.s4 1966171168
    %v1394 = vunpack.c.0.s8 %v1393
    %v1395 = vlaneseq
    %v1396 = vshrl.u32 %v1395, 7
    %v1397 = vsub.s32 %v1394, %v1396
    %v1398 = vrot.slane %v1391, %v1397
    %v1400 = vmul.f32 %v1311, %v1398
    %v1402 = vlaneseq
    %v1403 = vshrl.u32 %v1402, 7
    %v1404 = vsub.s32 0, %v1403
    %v1405 = vrot.slane %v1400, %v1404
    %v1406 = vlaneseq
    %v1407 = vshrl.u32 %v1406, 7
    %v1408 = vsub.s32 1, %v1407
    %v1409 = vrot.slane %v1400, %v1408
    %v1410 = vlaneseq
    %v1411 = vshrl.u32 %v1410, 7
    %v1412 = vsub.s32 2, %v1411
    %v1413 = vrot.slane %v1400, %v1412
    %v1417 = vmul.f32 %v1352, %v1405
    %v1418 = vmul.f32 %v1353, %v1409
    %v1419 = vmul.f32 %v1354, %v1413
    %v1423 = vcombine.low %v1417, %v1418
    %v1425 = vunpack.c.l.s4 1966171168
    %v1426 = vunpack.c.0.s8 %v1425
    %v1427 = vlaneseq
    %v1428 = vshrl.u32 %v1427, 7
    %v1429 = vsub.s32 %v1426, %v1428
    %v1430 = vrot.slane %v1423, %v1429
    %v1432 = vunpack.c.l.s4 1966171168
    %v1433 = vunpack.c.0.s8 %v1432
    %v1434 = vlaneseq
    %v1435 = vshrl.u32 %v1434, 7
    %v1436 = vsub.s32 %v1433, %v1435
    %v1437 = vrot.slane %v1419, %v1436
    %v1438 = vcombine.low %v1430, %v1437
    %v1440 = vunpack.c.l.s4 1966171168
    %v1441 = vunpack.c.0.s8 %v1440
    %v1442 = vlaneseq
    %v1443 = vshrl.u32 %v1442, 7
    %v1444 = vsub.s32 %v1441, %v1443
    %v1445 = vrot.slane %v1438, %v1444
    %v1447 = vsub.f32 %v1312, %v1445
    %v1448 = vmul.f32 %v1225, %v1405
    %v1449 = vmul.f32 %v1227, %v1409
    %v1450 = vmul.f32 %v1306, %v1413
    %v1452 = vlaneseq
    %v1453 = vshrl.u32 %v1452, 7
    %v1454 = vsub.s32 0, %v1453
    %v1455 = vrot.slane %v1447, %v1454
    %v1456 = vlaneseq
    %v1457 = vshrl.u32 %v1456, 7
    %v1458 = vsub.s32 1, %v1457
    %v1459 = vrot.slane %v1447, %v1458
    %v1460 = vlaneseq
    %v1461 = vshrl.u32 %v1460, 7
    %v1462 = vsub.s32 2, %v1461
    %v1463 = vrot.slane %v1447, %v1462
    %v1467 = vadd.f32 %v1448, %v1455
    %v1468 = vadd.f32 %v1449, %v1459
    %v1469 = vadd.f32 %v1450, %v1463
    %v1470 = vmax.f32 %v1467, 0.0
    %v1471 = vmax.f32 %v1468, 0.0
    %v1472 = vmax.f32 %v1469, 0.0
    %v1473 = vpack.c.bf16 %v1470, %v1470
    %v1474 = vpack.c.bf16 %v1471, %v1471
    %v1475 = vpack.c.bf16 %v1472, %v1472
    %v1476 = vld [vmem:[#allocation11] sm:$0xff]
    %v1477 = vld [vmem:[#allocation11 + $0x8] sm:$0xf]
    %v1478 = vld [vmem:[#allocation11 + $0xc] sm:$0xff]
    %v1479 = vld [vmem:[#allocation11 + $0x14] sm:$0xf]
    %v1480 = vld [vmem:[#allocation11 + $0x18] sm:$0xff]
    %v1481 = vld [vmem:[#allocation11 + $0x20] sm:$0xf]
    %v1482 = vld [vmem:[#allocation11 + $0x24] sm:$0xff]
    %v1483 = vld [vmem:[#allocation11 + $0x2c] sm:$0xf]
    %v1484 = vld [vmem:[#allocation11 + $0x30] sm:$0xff]
    %v1485 = vld [vmem:[#allocation11 + $0x38] sm:$0xf]
    %v1486 = vld [vmem:[#allocation11 + $0x3c] sm:$0xff]
    %v1487 = vld [vmem:[#allocation11 + $0x44] sm:$0xf]
    %v1488 = vld [vmem:[#allocation11 + $0x48] sm:$0xff]
    %v1489 = vld [vmem:[#allocation11 + $0x50] sm:$0xf]
    %v1490 = vld [vmem:[#allocation11 + $0x54] sm:$0xff]
    %v1491 = vld [vmem:[#allocation11 + $0x5c] sm:$0xf]
    %v1492 = vld [vmem:[#allocation11 + $0x60] sm:$0xff]
    %v1493 = vld [vmem:[#allocation11 + $0x68] sm:$0xf]
    %v1494 = vld [vmem:[#allocation11 + $0x6c] sm:$0xff]
    %v1495 = vld [vmem:[#allocation11 + $0x74] sm:$0xf]
    %v1496 = vld [vmem:[#allocation11 + $0x78] sm:$0xff]
    %v1497 = vld [vmem:[#allocation11 + $0x80] sm:$0xf]
    %v1498 = vld [vmem:[#allocation11 + $0x84] sm:$0xff]
    %v1499 = vld [vmem:[#allocation11 + $0x8c] sm:$0xf]
    %v1500 = vld [vmem:[#allocation11 + $0x90] sm:$0xff]
    %v1501 = vld [vmem:[#allocation11 + $0x98] sm:$0xf]
    %v1502 = vld [vmem:[#allocation11 + $0x9c] sm:$0xff]
    %v1503 = vld [vmem:[#allocation11 + $0xa4] sm:$0xf]
    %v1504 = vld [vmem:[#allocation11 + $0xa8] sm:$0xff]
    %v1505 = vld [vmem:[#allocation11 + $0xb0] sm:$0xf]
    %v1506 = vld [vmem:[#allocation11 + $0xb4] sm:$0xff]
    %v1507 = vld [vmem:[#allocation11 + $0xbc] sm:$0xf]
    %v1508 = vld [vmem:[#allocation11 + $0xc0] sm:$0xff]
    %v1509 = vld [vmem:[#allocation11 + $0xc8] sm:$0xf]
    %v1510 = vld [vmem:[#allocation11 + $0xcc] sm:$0xff]
    %v1511 = vld [vmem:[#allocation11 + $0xd4] sm:$0xf]
    %v1512 = vld [vmem:[#allocation11 + $0xd8] sm:$0xff]
    %v1513 = vld [vmem:[#allocation11 + $0xe0] sm:$0xf]
    %v1514 = vld [vmem:[#allocation11 + $0xe4] sm:$0xff]
    %v1515 = vld [vmem:[#allocation11 + $0xec] sm:$0xf]
    %v1516 = vld [vmem:[#allocation11 + $0xf0] sm:$0xff]
    %v1517 = vld [vmem:[#allocation11 + $0xf8] sm:$0xf]
    %v1518 = vld [vmem:[#allocation11 + $0xfc] sm:$0xff]
    %v1519 = vld [vmem:[#allocation11 + $0x104] sm:$0xf]
    %v1520 = vld [vmem:[#allocation11 + $0x108] sm:$0xff]
    %v1521 = vld [vmem:[#allocation11 + $0x110] sm:$0xf]
    %v1522 = vld [vmem:[#allocation11 + $0x114] sm:$0xff]
    %v1523 = vld [vmem:[#allocation11 + $0x11c] sm:$0xf]
    %v1524 = vld [vmem:[#allocation11 + $0x120] sm:$0xff]
    %v1525 = vld [vmem:[#allocation11 + $0x128] sm:$0xf]
    %v1526 = vld [vmem:[#allocation11 + $0x12c] sm:$0xff]
    %v1527 = vld [vmem:[#allocation11 + $0x134] sm:$0xf]
    %v1528 = vld [vmem:[#allocation11 + $0x138] sm:$0xff]
    %v1529 = vld [vmem:[#allocation11 + $0x140] sm:$0xf]
    %v1530 = vld [vmem:[#allocation11 + $0x144] sm:$0xff]
    %v1531 = vld [vmem:[#allocation11 + $0x14c] sm:$0xf]
    %v1532 = vld [vmem:[#allocation11 + $0x150] sm:$0xff]
    %v1533 = vld [vmem:[#allocation11 + $0x158] sm:$0xf]
    %v1534 = vld [vmem:[#allocation11 + $0x15c] sm:$0xff]
    %v1535 = vld [vmem:[#allocation11 + $0x164] sm:$0xf]
    %v1536 = vld [vmem:[#allocation11 + $0x168] sm:$0xff]
    %v1537 = vld [vmem:[#allocation11 + $0x170] sm:$0xf]
    %v1538 = vld [vmem:[#allocation11 + $0x174] sm:$0xff]
    %v1539 = vld [vmem:[#allocation11 + $0x17c] sm:$0xf]
    %v1540 = vld [vmem:[#allocation11 + $0x180] sm:$0xff]
    %v1541 = vld [vmem:[#allocation11 + $0x188] sm:$0xf]
    %v1542 = vld [vmem:[#allocation11 + $0x18c] sm:$0xff]
    %v1543 = vld [vmem:[#allocation11 + $0x194] sm:$0xf]
    %v1544 = vld [vmem:[#allocation11 + $0x198] sm:$0xff]
    %v1545 = vld [vmem:[#allocation11 + $0x1a0] sm:$0xf]
    %v1546 = vld [vmem:[#allocation11 + $0x1a4] sm:$0xff]
    %v1547 = vld [vmem:[#allocation11 + $0x1ac] sm:$0xf]
    %v1548 = vld [vmem:[#allocation11 + $0x1b0] sm:$0xff]
    %v1549 = vld [vmem:[#allocation11 + $0x1b8] sm:$0xf]
    %v1550 = vld [vmem:[#allocation11 + $0x1bc] sm:$0xff]
    %v1551 = vld [vmem:[#allocation11 + $0x1c4] sm:$0xf]
    %v1552 = vld [vmem:[#allocation11 + $0x1c8] sm:$0xff]
    %v1553 = vld [vmem:[#allocation11 + $0x1d0] sm:$0xf]
    %v1554 = vld [vmem:[#allocation11 + $0x1d4] sm:$0xff]
    %v1555 = vld [vmem:[#allocation11 + $0x1dc] sm:$0xf]
    %v1556 = vld [vmem:[#allocation11 + $0x1e0] sm:$0xff]
    %v1557 = vld [vmem:[#allocation11 + $0x1e8] sm:$0xf]
    %v1558 = vld [vmem:[#allocation11 + $0x1ec] sm:$0xff]
    %v1559 = vld [vmem:[#allocation11 + $0x1f4] sm:$0xf]
    %v1560 = vld [vmem:[#allocation11 + $0x1f8] sm:$0xff]
    %v1561 = vld [vmem:[#allocation11 + $0x200] sm:$0xf]
    %v1562 = vld [vmem:[#allocation11 + $0x204] sm:$0xff]
    %v1563 = vld [vmem:[#allocation11 + $0x20c] sm:$0xf]
    %v1564 = vld [vmem:[#allocation11 + $0x210] sm:$0xff]
    %v1565 = vld [vmem:[#allocation11 + $0x218] sm:$0xf]
    %v1566 = vld [vmem:[#allocation11 + $0x21c] sm:$0xff]
    %v1567 = vld [vmem:[#allocation11 + $0x224] sm:$0xf]
    %v1568 = vld [vmem:[#allocation11 + $0x228] sm:$0xff]
    %v1569 = vld [vmem:[#allocation11 + $0x230] sm:$0xf]
    %v1570 = vld [vmem:[#allocation11 + $0x234] sm:$0xff]
    %v1571 = vld [vmem:[#allocation11 + $0x23c] sm:$0xf]
    %v1572 = vld [vmem:[%s10] sm:$0x7]
    %v1574 = vlaneseq
    %v1575 = vshrl.u32 %v1574, 7
    %v1576 = vsub.s32 0, %v1575
    %v1577 = vrot.slane %v1572, %v1576
    %v1578 = vlaneseq
    %v1579 = vshrl.u32 %v1578, 7
    %v1580 = vsub.s32 1, %v1579
    %v1581 = vrot.slane %v1572, %v1580
    %v1582 = vlaneseq
    %v1583 = vshrl.u32 %v1582, 7
    %v1584 = vsub.s32 2, %v1583
    %v1585 = vrot.slane %v1572, %v1584
    %v1685 = vunpack.c.l.b16 %v1476
    %v1686 = vunpack.c.h.b16 %v1476
    %v1687 = vunpack.c.l.b16 %v1477
    %v1688 = vunpack.c.l.b16 %v1478
    %v1689 = vunpack.c.h.b16 %v1478
    %v1690 = vunpack.c.l.b16 %v1479
    %v1691 = vunpack.c.l.b16 %v1480
    %v1692 = vunpack.c.h.b16 %v1480
    %v1693 = vunpack.c.l.b16 %v1481
    %v1694 = vunpack.c.l.b16 %v1482
    %v1695 = vunpack.c.h.b16 %v1482
    %v1696 = vunpack.c.l.b16 %v1483
    %v1697 = vunpack.c.l.b16 %v1484
    %v1698 = vunpack.c.h.b16 %v1484
    %v1699 = vunpack.c.l.b16 %v1485
    %v1700 = vunpack.c.l.b16 %v1486
    %v1701 = vunpack.c.h.b16 %v1486
    %v1702 = vunpack.c.l.b16 %v1487
    %v1703 = vunpack.c.l.b16 %v1488
    %v1704 = vunpack.c.h.b16 %v1488
    %v1705 = vunpack.c.l.b16 %v1489
    %v1706 = vunpack.c.l.b16 %v1490
    %v1707 = vunpack.c.h.b16 %v1490
    %v1708 = vunpack.c.l.b16 %v1491
    %v1709 = vunpack.c.l.b16 %v1492
    %v1710 = vunpack.c.h.b16 %v1492
    %v1711 = vunpack.c.l.b16 %v1493
    %v1712 = vunpack.c.l.b16 %v1494
    %v1713 = vunpack.c.h.b16 %v1494
    %v1714 = vunpack.c.l.b16 %v1495
    %v1715 = vunpack.c.l.b16 %v1496
    %v1716 = vunpack.c.h.b16 %v1496
    %v1717 = vunpack.c.l.b16 %v1497
    %v1718 = vunpack.c.l.b16 %v1498
    %v1719 = vunpack.c.h.b16 %v1498
    %v1720 = vunpack.c.l.b16 %v1499
    %v1721 = vunpack.c.l.b16 %v1500
    %v1722 = vunpack.c.h.b16 %v1500
    %v1723 = vunpack.c.l.b16 %v1501
    %v1724 = vunpack.c.l.b16 %v1502
    %v1725 = vunpack.c.h.b16 %v1502
    %v1726 = vunpack.c.l.b16 %v1503
    %v1727 = vunpack.c.l.b16 %v1504
    %v1728 = vunpack.c.h.b16 %v1504
    %v1729 = vunpack.c.l.b16 %v1505
    %v1730 = vunpack.c.l.b16 %v1506
    %v1731 = vunpack.c.h.b16 %v1506
    %v1732 = vunpack.c.l.b16 %v1507
    %v1733 = vunpack.c.l.b16 %v1508
    %v1734 = vunpack.c.h.b16 %v1508
    %v1735 = vunpack.c.l.b16 %v1509
    %v1736 = vunpack.c.l.b16 %v1510
    %v1737 = vunpack.c.h.b16 %v1510
    %v1738 = vunpack.c.l.b16 %v1511
    %v1739 = vunpack.c.l.b16 %v1512
    %v1740 = vunpack.c.h.b16 %v1512
    %v1741 = vunpack.c.l.b16 %v1513
    %v1742 = vunpack.c.l.b16 %v1514
    %v1743 = vunpack.c.h.b16 %v1514
    %v1744 = vunpack.c.l.b16 %v1515
    %v1745 = vunpack.c.l.b16 %v1516
    %v1746 = vunpack.c.h.b16 %v1516
    %v1747 = vunpack.c.l.b16 %v1517
    %v1748 = vunpack.c.l.b16 %v1518
    %v1749 = vunpack.c.h.b16 %v1518
    %v1750 = vunpack.c.l.b16 %v1519
    %v1751 = vunpack.c.l.b16 %v1520
    %v1752 = vunpack.c.h.b16 %v1520
    %v1753 = vunpack.c.l.b16 %v1521
    %v1754 = vunpack.c.l.b16 %v1522
    %v1755 = vunpack.c.h.b16 %v1522
    %v1756 = vunpack.c.l.b16 %v1523
    %v1757 = vunpack.c.l.b16 %v1524
    %v1758 = vunpack.c.h.b16 %v1524
    %v1759 = vunpack.c.l.b16 %v1525
    %v1760 = vunpack.c.l.b16 %v1526
    %v1761 = vunpack.c.h.b16 %v1526
    %v1762 = vunpack.c.l.b16 %v1527
    %v1763 = vunpack.c.l.b16 %v1528
    %v1764 = vunpack.c.h.b16 %v1528
    %v1765 = vunpack.c.l.b16 %v1529
    %v1766 = vunpack.c.l.b16 %v1530
    %v1767 = vunpack.c.h.b16 %v1530
    %v1768 = vunpack.c.l.b16 %v1531
    %v1769 = vunpack.c.l.b16 %v1532
    %v1770 = vunpack.c.h.b16 %v1532
    %v1771 = vunpack.c.l.b16 %v1533
    %v1772 = vunpack.c.l.b16 %v1534
    %v1773 = vunpack.c.h.b16 %v1534
    %v1774 = vunpack.c.l.b16 %v1535
    %v1775 = vunpack.c.l.b16 %v1536
    %v1776 = vunpack.c.h.b16 %v1536
    %v1777 = vunpack.c.l.b16 %v1537
    %v1778 = vunpack.c.l.b16 %v1538
    %v1779 = vunpack.c.h.b16 %v1538
    %v1780 = vunpack.c.l.b16 %v1539
    %v1781 = vunpack.c.l.b16 %v1540
    %v1782 = vunpack.c.h.b16 %v1540
    %v1783 = vunpack.c.l.b16 %v1541
    %v1784 = vunpack.c.l.b16 %v1542
    %v1785 = vunpack.c.h.b16 %v1542
    %v1786 = vunpack.c.l.b16 %v1543
    %v1787 = vunpack.c.l.b16 %v1544
    %v1788 = vunpack.c.h.b16 %v1544
    %v1789 = vunpack.c.l.b16 %v1545
    %v1790 = vunpack.c.l.b16 %v1546
    %v1791 = vunpack.c.h.b16 %v1546
    %v1792 = vunpack.c.l.b16 %v1547
    %v1793 = vunpack.c.l.b16 %v1548
    %v1794 = vunpack.c.h.b16 %v1548
    %v1795 = vunpack.c.l.b16 %v1549
    %v1796 = vunpack.c.l.b16 %v1550
    %v1797 = vunpack.c.h.b16 %v1550
    %v1798 = vunpack.c.l.b16 %v1551
    %v1799 = vunpack.c.l.b16 %v1552
    %v1800 = vunpack.c.h.b16 %v1552
    %v1801 = vunpack.c.l.b16 %v1553
    %v1802 = vunpack.c.l.b16 %v1554
    %v1803 = vunpack.c.h.b16 %v1554
    %v1804 = vunpack.c.l.b16 %v1555
    %v1805 = vunpack.c.l.b16 %v1556
    %v1806 = vunpack.c.h.b16 %v1556
    %v1807 = vunpack.c.l.b16 %v1557
    %v1808 = vunpack.c.l.b16 %v1558
    %v1809 = vunpack.c.h.b16 %v1558
    %v1810 = vunpack.c.l.b16 %v1559
    %v1811 = vunpack.c.l.b16 %v1560
    %v1812 = vunpack.c.h.b16 %v1560
    %v1813 = vunpack.c.l.b16 %v1561
    %v1814 = vunpack.c.l.b16 %v1562
    %v1815 = vunpack.c.h.b16 %v1562
    %v1816 = vunpack.c.l.b16 %v1563
    %v1817 = vunpack.c.l.b16 %v1564
    %v1818 = vunpack.c.h.b16 %v1564
    %v1819 = vunpack.c.l.b16 %v1565
    %v1820 = vunpack.c.l.b16 %v1566
    %v1821 = vunpack.c.h.b16 %v1566
    %v1822 = vunpack.c.l.b16 %v1567
    %v1823 = vunpack.c.l.b16 %v1568
    %v1824 = vunpack.c.h.b16 %v1568
    %v1825 = vunpack.c.l.b16 %v1569
    %v1826 = vunpack.c.l.b16 %v1570
    %v1827 = vunpack.c.h.b16 %v1570
    %v1828 = vunpack.c.l.b16 %v1571
    %v1829 = vpack.c.b16 %v1688, %v1685
    %v1830 = vpack.c.b16 %v1689, %v1686
    %v1831 = vpack.c.b16 %v1690, %v1687
    %v1832 = vpack.c.b16 %v1694, %v1691
    %v1833 = vpack.c.b16 %v1695, %v1692
    %v1834 = vpack.c.b16 %v1696, %v1693
    %v1835 = vpack.c.b16 %v1700, %v1697
    %v1836 = vpack.c.b16 %v1701, %v1698
    %v1837 = vpack.c.b16 %v1702, %v1699
    %v1838 = vpack.c.b16 %v1706, %v1703
    %v1839 = vpack.c.b16 %v1707, %v1704
    %v1840 = vpack.c.b16 %v1708, %v1705
    %v1841 = vpack.c.b16 %v1712, %v1709
    %v1842 = vpack.c.b16 %v1713, %v1710
    %v1843 = vpack.c.b16 %v1714, %v1711
    %v1844 = vpack.c.b16 %v1718, %v1715
    %v1845 = vpack.c.b16 %v1719, %v1716
    %v1846 = vpack.c.b16 %v1720, %v1717
    %v1847 = vpack.c.b16 %v1724, %v1721
    %v1848 = vpack.c.b16 %v1725, %v1722
    %v1849 = vpack.c.b16 %v1726, %v1723
    %v1850 = vpack.c.b16 %v1730, %v1727
    %v1851 = vpack.c.b16 %v1731, %v1728
    %v1852 = vpack.c.b16 %v1732, %v1729
    %v1853 = vpack.c.b16 %v1736, %v1733
    %v1854 = vpack.c.b16 %v1737, %v1734
    %v1855 = vpack.c.b16 %v1738, %v1735
    %v1856 = vpack.c.b16 %v1742, %v1739
    %v1857 = vpack.c.b16 %v1743, %v1740
    %v1858 = vpack.c.b16 %v1744, %v1741
    %v1859 = vpack.c.b16 %v1748, %v1745
    %v1860 = vpack.c.b16 %v1749, %v1746
    %v1861 = vpack.c.b16 %v1750, %v1747
    %v1862 = vpack.c.b16 %v1754, %v1751
    %v1863 = vpack.c.b16 %v1755, %v1752
    %v1864 = vpack.c.b16 %v1756, %v1753
    %v1865 = vpack.c.b16 %v1760, %v1757
    %v1866 = vpack.c.b16 %v1761, %v1758
    %v1867 = vpack.c.b16 %v1762, %v1759
    %v1868 = vpack.c.b16 %v1766, %v1763
    %v1869 = vpack.c.b16 %v1767, %v1764
    %v1870 = vpack.c.b16 %v1768, %v1765
    %v1871 = vpack.c.b16 %v1772, %v1769
    %v1872 = vpack.c.b16 %v1773, %v1770
    %v1873 = vpack.c.b16 %v1774, %v1771
    %v1874 = vpack.c.b16 %v1778, %v1775
    %v1875 = vpack.c.b16 %v1779, %v1776
    %v1876 = vpack.c.b16 %v1780, %v1777
    %v1877 = vpack.c.b16 %v1784, %v1781
    %v1878 = vpack.c.b16 %v1785, %v1782
    %v1879 = vpack.c.b16 %v1786, %v1783
    %v1880 = vpack.c.b16 %v1790, %v1787
    %v1881 = vpack.c.b16 %v1791, %v1788
    %v1882 = vpack.c.b16 %v1792, %v1789
    %v1883 = vpack.c.b16 %v1796, %v1793
    %v1884 = vpack.c.b16 %v1797, %v1794
    %v1885 = vpack.c.b16 %v1798, %v1795
    %v1886 = vpack.c.b16 %v1802, %v1799
    %v1887 = vpack.c.b16 %v1803, %v1800
    %v1888 = vpack.c.b16 %v1804, %v1801
    %v1889 = vpack.c.b16 %v1808, %v1805
    %v1890 = vpack.c.b16 %v1809, %v1806
    %v1891 = vpack.c.b16 %v1810, %v1807
    %v1892 = vpack.c.b16 %v1814, %v1811
    %v1893 = vpack.c.b16 %v1815, %v1812
    %v1894 = vpack.c.b16 %v1816, %v1813
    %v1895 = vpack.c.b16 %v1820, %v1817
    %v1896 = vpack.c.b16 %v1821, %v1818
    %v1897 = vpack.c.b16 %v1822, %v1819
    %v1898 = vpack.c.b16 %v1826, %v1823
    %v1899 = vpack.c.b16 %v1827, %v1824
    %v1900 = vpack.c.b16 %v1828, %v1825
    %1973 = vmatprep.subr.bf16.mxu0 %v1830
    %1974 = vmatpush1.bf16.msra.mxu0 %v1829
    %1975 = vmatprep.subr.bf16.mxu0 %v1833
    %1976 = vmatpush1.bf16.msra.mxu0 %v1832
    %1977 = vmatprep.subr.bf16.mxu0 %v1836
    %1978 = vmatpush1.bf16.msra.mxu0 %v1835
    %1979 = vmatprep.subr.bf16.mxu0 %v1839
    %1980 = vmatpush1.bf16.msra.mxu0 %v1838
    %1981 = vmatprep.subr.bf16.mxu0 %v1842
    %1982 = vmatpush1.bf16.msra.mxu0 %v1841
    %1983 = vmatprep.subr.bf16.mxu0 %v1845
    %1984 = vmatpush1.bf16.msra.mxu0 %v1844
    %1985 = vmatprep.subr.bf16.mxu0 %v1848
    %1986 = vmatpush1.bf16.msra.mxu0 %v1847
    %1987 = vmatprep.subr.bf16.mxu0 %v1851
    %1988 = vmatpush1.bf16.msra.mxu0 %v1850
    %1989 = vmatprep.subr.bf16.mxu0 %v1854
    %1990 = vmatpush1.bf16.msra.mxu0 %v1853
    %1991 = vmatprep.subr.bf16.mxu0 %v1857
    %1992 = vmatpush1.bf16.msra.mxu0 %v1856
    %1993 = vmatprep.subr.bf16.mxu0 %v1860
    %1994 = vmatpush1.bf16.msra.mxu0 %v1859
    %1995 = vmatprep.subr.bf16.mxu0 %v1863
    %1996 = vmatpush1.bf16.msra.mxu0 %v1862
    %1997 = vmatprep.subr.bf16.mxu0 %v1866
    %1998 = vmatpush1.bf16.msra.mxu0 %v1865
    %1999 = vmatprep.subr.bf16.mxu0 %v1869
    %2000 = vmatpush1.bf16.msra.mxu0 %v1868
    %2001 = vmatprep.subr.bf16.mxu0 %v1872
    %2002 = vmatpush1.bf16.msra.mxu0 %v1871
    %2003 = vmatprep.subr.bf16.mxu0 %v1875
    %2004 = vmatpush1.bf16.msra.mxu0 %v1874
    %2005 = vmatprep.mubr.bf16.mxu0 %v1474
    %2006 = vmatmul.mubr.bf16.gmra.mrb[0].mxu0 %v1473
    %v2007 = vpop.f32.mrb[0].mxu0
    %v2008 = vadd.f32 %v1577, %v2007
    %v2009 = vpop.f32.mrb[0].mxu0
    %v2010 = vadd.f32 %v1581, %v2009
    %v2011 = vpop.f32.mrb[0].mxu0
    %v2012 = vpop.f32.mrb[0].mxu0
    %2013 = vdwg.mxu0
    %2014 = vmatprep.subr.bf16.mxu0 %v1878
    %2015 = vmatpush1.bf16.msra.mxu0 %v1877
    %2016 = vmatprep.subr.bf16.mxu0 %v1881
    %2017 = vmatpush1.bf16.msra.mxu0 %v1880
    %2018 = vmatprep.subr.bf16.mxu0 %v1884
    %2019 = vmatpush1.bf16.msra.mxu0 %v1883
    %2020 = vmatprep.subr.bf16.mxu0 %v1887
    %2021 = vmatpush1.bf16.msra.mxu0 %v1886
    %2022 = vmatprep.subr.bf16.mxu0 %v1890
    %2023 = vmatpush1.bf16.msra.mxu0 %v1889
    %2024 = vmatprep.subr.bf16.mxu0 %v1893
    %2025 = vmatpush1.bf16.msra.mxu0 %v1892
    %2026 = vmatprep.subr.bf16.mxu0 %v1896
    %2027 = vmatpush1.bf16.msra.mxu0 %v1895
    %2028 = vmatprep.subr.bf16.mxu0 %v1899
    %2029 = vmatpush1.bf16.msra.mxu0 %v1898
    %2030 = vmatprep.subr.bf16.mxu0 0
    %2031 = vmatpush1.bf16.msra.mxu0 0
    %2032 = vmatprep.subr.bf16.mxu0 0
    %2033 = vmatpush1.bf16.msra.mxu0 0
    %2034 = vmatprep.subr.bf16.mxu0 0
    %2035 = vmatpush1.bf16.msra.mxu0 0
    %2036 = vmatprep.subr.bf16.mxu0 0
    %2037 = vmatpush1.bf16.msra.mxu0 0
    %2038 = vmatprep.subr.bf16.mxu0 0
    %2039 = vmatpush1.bf16.msra.mxu0 0
    %2040 = vmatprep.subr.bf16.mxu0 0
    %2041 = vmatpush1.bf16.msra.mxu0 0
    %2042 = vmatprep.subr.bf16.mxu0 0
    %2043 = vmatpush1.bf16.msra.mxu0 0
    %2044 = vmatprep.subr.bf16.mxu0 0
    %2045 = vmatpush1.bf16.msra.mxu0 0
    %2046 = vmatprep.mubr.bf16.mxu0 0
    %2047 = vmatmul.mubr.bf16.gmra.mrb[0].mxu0 %v1475
    %v2048 = vpop.f32.mrb[0].mxu0
    %v2049 = vadd.f32 %v2008, %v2048
    %v2050 = vpop.f32.mrb[0].mxu0
    %v2051 = vadd.f32 %v2010, %v2050
    %v2052 = vpop.f32.mrb[0].mxu0
    %v2053 = vpop.f32.mrb[0].mxu0
    %2054 = vdwg.mxu0
    %2055 = vmatprep.subr.bf16.mxu0 0
    %2056 = vmatpush1.bf16.msra.mxu0 %v1831
    %2057 = vmatprep.subr.bf16.mxu0 0
    %2058 = vmatpush1.bf16.msra.mxu0 %v1834
    %2059 = vmatprep.subr.bf16.mxu0 0
    %2060 = vmatpush1.bf16.msra.mxu0 %v1837
    %2061 = vmatprep.subr.bf16.mxu0 0
    %2062 = vmatpush1.bf16.msra.mxu0 %v1840
    %2063 = vmatprep.subr.bf16.mxu0 0
    %2064 = vmatpush1.bf16.msra.mxu0 %v1843
    %2065 = vmatprep.subr.bf16.mxu0 0
    %2066 = vmatpush1.bf16.msra.mxu0 %v1846
    %2067 = vmatprep.subr.bf16.mxu0 0
    %2068 = vmatpush1.bf16.msra.mxu0 %v1849
    %2069 = vmatprep.subr.bf16.mxu0 0
    %2070 = vmatpush1.bf16.msra.mxu0 %v1852
    %2071 = vmatprep.subr.bf16.mxu0 0
    %2072 = vmatpush1.bf16.msra.mxu0 %v1855
    %2073 = vmatprep.subr.bf16.mxu0 0
    %2074 = vmatpush1.bf16.msra.mxu0 %v1858
    %2075 = vmatprep.subr.bf16.mxu0 0
    %2076 = vmatpush1.bf16.msra.mxu0 %v1861
    %2077 = vmatprep.subr.bf16.mxu0 0
    %2078 = vmatpush1.bf16.msra.mxu0 %v1864
    %2079 = vmatprep.subr.bf16.mxu0 0
    %2080 = vmatpush1.bf16.msra.mxu0 %v1867
    %2081 = vmatprep.subr.bf16.mxu0 0
    %2082 = vmatpush1.bf16.msra.mxu0 %v1870
    %2083 = vmatprep.subr.bf16.mxu0 0
    %2084 = vmatpush1.bf16.msra.mxu0 %v1873
    %2085 = vmatprep.subr.bf16.mxu0 0
    %2086 = vmatpush1.bf16.msra.mxu0 %v1876
    %2087 = vmatprep.mubr.bf16.mxu0 %v1474
    %2088 = vmatmul.mubr.bf16.gmra.mrb[0].mxu0 %v1473
    %v2089 = vpop.f32.mrb[0].mxu0
    %v2090 = vadd.f32 %v1585, %v2089
    %v2091 = vpop.f32.mrb[0].mxu0
    %v2092 = vpop.f32.mrb[0].mxu0
    %v2093 = vpop.f32.mrb[0].mxu0
    %2094 = vdwg.mxu0
    %2095 = vmatprep.subr.bf16.mxu0 0
    %2096 = vmatpush1.bf16.msra.mxu0 %v1879
    %2097 = vmatprep.subr.bf16.mxu0 0
    %2098 = vmatpush1.bf16.msra.mxu0 %v1882
    %2099 = vmatprep.subr.bf16.mxu0 0
    %2100 = vmatpush1.bf16.msra.mxu0 %v1885
    %2101 = vmatprep.subr.bf16.mxu0 0
    %2102 = vmatpush1.bf16.msra.mxu0 %v1888
    %2103 = vmatprep.subr.bf16.mxu0 0
    %2104 = vmatpush1.bf16.msra.mxu0 %v1891
    %2105 = vmatprep.subr.bf16.mxu0 0
    %2106 = vmatpush1.bf16.msra.mxu0 %v1894
    %2107 = vmatprep.subr.bf16.mxu0 0
    %2108 = vmatpush1.bf16.msra.mxu0 %v1897
    %2109 = vmatprep.subr.bf16.mxu0 0
    %2110 = vmatpush1.bf16.msra.mxu0 %v1900
    %2111 = vmatprep.subr.bf16.mxu0 0
    %2112 = vmatpush1.bf16.msra.mxu0 0
    %2113 = vmatprep.subr.bf16.mxu0 0
    %2114 = vmatpush1.bf16.msra.mxu0 0
    %2115 = vmatprep.subr.bf16.mxu0 0
    %2116 = vmatpush1.bf16.msra.mxu0 0
    %2117 = vmatprep.subr.bf16.mxu0 0
    %2118 = vmatpush1.bf16.msra.mxu0 0
    %2119 = vmatprep.subr.bf16.mxu0 0
    %2120 = vmatpush1.bf16.msra.mxu0 0
    %2121 = vmatprep.subr.bf16.mxu0 0
    %2122 = vmatpush1.bf16.msra.mxu0 0
    %2123 = vmatprep.subr.bf16.mxu0 0
    %2124 = vmatpush1.bf16.msra.mxu0 0
    %2125 = vmatprep.subr.bf16.mxu0 0
    %2126 = vmatpush1.bf16.msra.mxu0 0
    %2127 = vmatprep.mubr.bf16.mxu0 0
    %2128 = vmatmul.mubr.bf16.gmra.mrb[0].mxu0 %v1475
    %v2129 = vpop.f32.mrb[0].mxu0
    %v2130 = vadd.f32 %v2090, %v2129
    %v2131 = vpop.f32.mrb[0].mxu0
    %v2132 = vpop.f32.mrb[0].mxu0
    %v2133 = vpop.f32.mrb[0].mxu0
    %2134 = vdwg.mxu0
    %v2135 = vmax.f32 %v2049, 0.0
    %v2136 = vmax.f32 %v2051, 0.0
    %v2137 = vmax.f32 %v2130, 0.0
    %v2138 = vpack.c.bf16 %v2135, %v2135
    %v2139 = vpack.c.bf16 %v2136, %v2136
    %v2140 = vpack.c.bf16 %v2137, %v2137
    %v2141 = vld [vmem:[#allocation13] sm:$0xf]
    %v2142 = vld [vmem:[#allocation13 + $0x4] sm:$0xf]
    %v2143 = vld [vmem:[#allocation13 + $0x8] sm:$0xf]
    %v2144 = vld [vmem:[#allocation13 + $0xc] sm:$0xf]
    %v2145 = vld [vmem:[#allocation13 + $0x10] sm:$0xf]
    %v2146 = vld [vmem:[#allocation13 + $0x14] sm:$0xf]
    %v2147 = vld [vmem:[#allocation13 + $0x18] sm:$0xf]
    %v2148 = vld [vmem:[#allocation13 + $0x1c] sm:$0xf]
    %v2149 = vld [vmem:[#allocation13 + $0x20] sm:$0xf]
    %v2150 = vld [vmem:[#allocation13 + $0x24] sm:$0xf]
    %v2151 = vld [vmem:[#allocation13 + $0x28] sm:$0xf]
    %v2152 = vld [vmem:[#allocation13 + $0x2c] sm:$0xf]
    %v2153 = vld [vmem:[#allocation13 + $0x30] sm:$0xf]
    %v2154 = vld [vmem:[#allocation13 + $0x34] sm:$0xf]
    %v2155 = vld [vmem:[#allocation13 + $0x38] sm:$0xf]
    %v2156 = vld [vmem:[#allocation13 + $0x3c] sm:$0xf]
    %v2157 = vld [vmem:[#allocation13 + $0x40] sm:$0xf]
    %v2158 = vld [vmem:[#allocation13 + $0x44] sm:$0xf]
    %v2159 = vld [vmem:[#allocation13 + $0x48] sm:$0xf]
    %v2160 = vld [vmem:[#allocation13 + $0x4c] sm:$0xf]
    %v2161 = vld [vmem:[#allocation13 + $0x50] sm:$0xf]
    %v2162 = vld [vmem:[#allocation13 + $0x54] sm:$0xf]
    %v2163 = vld [vmem:[#allocation13 + $0x58] sm:$0xf]
    %v2164 = vld [vmem:[#allocation13 + $0x5c] sm:$0xf]
    %v2165 = vld [vmem:[#allocation13 + $0x60] sm:$0xf]
    %v2166 = vld [vmem:[#allocation13 + $0x64] sm:$0xf]
    %v2167 = vld [vmem:[#allocation13 + $0x68] sm:$0xf]
    %v2168 = vld [vmem:[#allocation13 + $0x6c] sm:$0xf]
    %v2169 = vld [vmem:[#allocation13 + $0x70] sm:$0xf]
    %v2170 = vld [vmem:[#allocation13 + $0x74] sm:$0xf]
    %v2171 = vld [vmem:[#allocation13 + $0x78] sm:$0xf]
    %v2172 = vld [vmem:[#allocation13 + $0x7c] sm:$0xf]
    %v2173 = vld [vmem:[#allocation13 + $0x80] sm:$0xf]
    %v2174 = vld [vmem:[#allocation13 + $0x84] sm:$0xf]
    %v2175 = vld [vmem:[#allocation13 + $0x88] sm:$0xf]
    %v2176 = vld [vmem:[#allocation13 + $0x8c] sm:$0xf]
    %v2177 = vld [vmem:[#allocation13 + $0x90] sm:$0xf]
    %v2178 = vld [vmem:[#allocation13 + $0x94] sm:$0xf]
    %v2179 = vld [vmem:[#allocation13 + $0x98] sm:$0xf]
    %v2180 = vld [vmem:[#allocation13 + $0x9c] sm:$0xf]
    %v2181 = vld [vmem:[#allocation13 + $0xa0] sm:$0xf]
    %v2182 = vld [vmem:[#allocation13 + $0xa4] sm:$0xf]
    %v2183 = vld [vmem:[#allocation13 + $0xa8] sm:$0xf]
    %v2184 = vld [vmem:[#allocation13 + $0xac] sm:$0xf]
    %v2185 = vld [vmem:[#allocation13 + $0xb0] sm:$0xf]
    %v2186 = vld [vmem:[#allocation13 + $0xb4] sm:$0xf]
    %v2187 = vld [vmem:[#allocation13 + $0xb8] sm:$0xf]
    %v2188 = vld [vmem:[#allocation13 + $0xbc] sm:$0xf]
    %v2189 = vld [vmem:[%s12] sm:$0x1]
    %v2191 = vlaneseq
    %v2192 = vshrl.u32 %v2191, 7
    %v2193 = vsub.s32 0, %v2192
    %v2194 = vrot.slane %v2189, %v2193
    %v2244 = vunpack.c.l.b16 %v2141
    %v2245 = vunpack.c.l.b16 %v2142
    %v2246 = vunpack.c.l.b16 %v2143
    %v2247 = vunpack.c.l.b16 %v2144
    %v2248 = vunpack.c.l.b16 %v2145
    %v2249 = vunpack.c.l.b16 %v2146
    %v2250 = vunpack.c.l.b16 %v2147
    %v2251 = vunpack.c.l.b16 %v2148
    %v2252 = vunpack.c.l.b16 %v2149
    %v2253 = vunpack.c.l.b16 %v2150
    %v2254 = vunpack.c.l.b16 %v2151
    %v2255 = vunpack.c.l.b16 %v2152
    %v2256 = vunpack.c.l.b16 %v2153
    %v2257 = vunpack.c.l.b16 %v2154
    %v2258 = vunpack.c.l.b16 %v2155
    %v2259 = vunpack.c.l.b16 %v2156
    %v2260 = vunpack.c.l.b16 %v2157
    %v2261 = vunpack.c.l.b16 %v2158
    %v2262 = vunpack.c.l.b16 %v2159
    %v2263 = vunpack.c.l.b16 %v2160
    %v2264 = vunpack.c.l.b16 %v2161
    %v2265 = vunpack.c.l.b16 %v2162
    %v2266 = vunpack.c.l.b16 %v2163
    %v2267 = vunpack.c.l.b16 %v2164
    %v2268 = vunpack.c.l.b16 %v2165
    %v2269 = vunpack.c.l.b16 %v2166
    %v2270 = vunpack.c.l.b16 %v2167
    %v2271 = vunpack.c.l.b16 %v2168
    %v2272 = vunpack.c.l.b16 %v2169
    %v2273 = vunpack.c.l.b16 %v2170
    %v2274 = vunpack.c.l.b16 %v2171
    %v2275 = vunpack.c.l.b16 %v2172
    %v2276 = vunpack.c.l.b16 %v2173
    %v2277 = vunpack.c.l.b16 %v2174
    %v2278 = vunpack.c.l.b16 %v2175
    %v2279 = vunpack.c.l.b16 %v2176
    %v2280 = vunpack.c.l.b16 %v2177
    %v2281 = vunpack.c.l.b16 %v2178
    %v2282 = vunpack.c.l.b16 %v2179
    %v2283 = vunpack.c.l.b16 %v2180
    %v2284 = vunpack.c.l.b16 %v2181
    %v2285 = vunpack.c.l.b16 %v2182
    %v2286 = vunpack.c.l.b16 %v2183
    %v2287 = vunpack.c.l.b16 %v2184
    %v2288 = vunpack.c.l.b16 %v2185
    %v2289 = vunpack.c.l.b16 %v2186
    %v2290 = vunpack.c.l.b16 %v2187
    %v2291 = vunpack.c.l.b16 %v2188
    %v2292 = vpack.c.b16 %v2245, %v2244
    %v2293 = vpack.c.b16 %v2247, %v2246
    %v2294 = vpack.c.b16 %v2249, %v2248
    %v2295 = vpack.c.b16 %v2251, %v2250
    %v2296 = vpack.c.b16 %v2253, %v2252
    %v2297 = vpack.c.b16 %v2255, %v2254
    %v2298 = vpack.c.b16 %v2257, %v2256
    %v2299 = vpack.c.b16 %v2259, %v2258
    %v2300 = vpack.c.b16 %v2261, %v2260
    %v2301 = vpack.c.b16 %v2263, %v2262
    %v2302 = vpack.c.b16 %v2265, %v2264
    %v2303 = vpack.c.b16 %v2267, %v2266
    %v2304 = vpack.c.b16 %v2269, %v2268
    %v2305 = vpack.c.b16 %v2271, %v2270
    %v2306 = vpack.c.b16 %v2273, %v2272
    %v2307 = vpack.c.b16 %v2275, %v2274
    %v2308 = vpack.c.b16 %v2277, %v2276
    %v2309 = vpack.c.b16 %v2279, %v2278
    %v2310 = vpack.c.b16 %v2281, %v2280
    %v2311 = vpack.c.b16 %v2283, %v2282
    %v2312 = vpack.c.b16 %v2285, %v2284
    %v2313 = vpack.c.b16 %v2287, %v2286
    %v2314 = vpack.c.b16 %v2289, %v2288
    %v2315 = vpack.c.b16 %v2291, %v2290
    %2340 = vmatprep.subr.bf16.mxu0 0
    %2341 = vmatpush1.bf16.msra.mxu0 %v2292
    %2342 = vmatprep.subr.bf16.mxu0 0
    %2343 = vmatpush1.bf16.msra.mxu0 %v2293
    %2344 = vmatprep.subr.bf16.mxu0 0
    %2345 = vmatpush1.bf16.msra.mxu0 %v2294
    %2346 = vmatprep.subr.bf16.mxu0 0
    %2347 = vmatpush1.bf16.msra.mxu0 %v2295
    %2348 = vmatprep.subr.bf16.mxu0 0
    %2349 = vmatpush1.bf16.msra.mxu0 %v2296
    %2350 = vmatprep.subr.bf16.mxu0 0
    %2351 = vmatpush1.bf16.msra.mxu0 %v2297
    %2352 = vmatprep.subr.bf16.mxu0 0
    %2353 = vmatpush1.bf16.msra.mxu0 %v2298
    %2354 = vmatprep.subr.bf16.mxu0 0
    %2355 = vmatpush1.bf16.msra.mxu0 %v2299
    %2356 = vmatprep.subr.bf16.mxu0 0
    %2357 = vmatpush1.bf16.msra.mxu0 %v2300
    %2358 = vmatprep.subr.bf16.mxu0 0
    %2359 = vmatpush1.bf16.msra.mxu0 %v2301
    %2360 = vmatprep.subr.bf16.mxu0 0
    %2361 = vmatpush1.bf16.msra.mxu0 %v2302
    %2362 = vmatprep.subr.bf16.mxu0 0
    %2363 = vmatpush1.bf16.msra.mxu0 %v2303
    %2364 = vmatprep.subr.bf16.mxu0 0
    %2365 = vmatpush1.bf16.msra.mxu0 %v2304
    %2366 = vmatprep.subr.bf16.mxu0 0
    %2367 = vmatpush1.bf16.msra.mxu0 %v2305
    %2368 = vmatprep.subr.bf16.mxu0 0
    %2369 = vmatpush1.bf16.msra.mxu0 %v2306
    %2370 = vmatprep.subr.bf16.mxu0 0
    %2371 = vmatpush1.bf16.msra.mxu0 %v2307
    %2372 = vmatprep.mubr.bf16.mxu0 %v2139
    %2373 = vmatmul.mubr.bf16.gmra.mrb[0].mxu0 %v2138
    %v2374 = vpop.f32.mrb[0].mxu0
    %v2375 = vadd.f32 %v2194, %v2374
    %v2376 = vpop.f32.mrb[0].mxu0
    %v2377 = vpop.f32.mrb[0].mxu0
    %v2378 = vpop.f32.mrb[0].mxu0
    %2379 = vdwg.mxu0
    %2380 = vmatprep.subr.bf16.mxu0 0
    %2381 = vmatpush1.bf16.msra.mxu0 %v2308
    %2382 = vmatprep.subr.bf16.mxu0 0
    %2383 = vmatpush1.bf16.msra.mxu0 %v2309
    %2384 = vmatprep.subr.bf16.mxu0 0
    %2385 = vmatpush1.bf16.msra.mxu0 %v2310
    %2386 = vmatprep.subr.bf16.mxu0 0
    %2387 = vmatpush1.bf16.msra.mxu0 %v2311
    %2388 = vmatprep.subr.bf16.mxu0 0
    %2389 = vmatpush1.bf16.msra.mxu0 %v2312
    %2390 = vmatprep.subr.bf16.mxu0 0
    %2391 = vmatpush1.bf16.msra.mxu0 %v2313
    %2392 = vmatprep.subr.bf16.mxu0 0
    %2393 = vmatpush1.bf16.msra.mxu0 %v2314
    %2394 = vmatprep.subr.bf16.mxu0 0
    %2395 = vmatpush1.bf16.msra.mxu0 %v2315
    %2396 = vmatprep.subr.bf16.mxu0 0
    %2397 = vmatpush1.bf16.msra.mxu0 0
    %2398 = vmatprep.subr.bf16.mxu0 0
    %2399 = vmatpush1.bf16.msra.mxu0 0
    %2400 = vmatprep.subr.bf16.mxu0 0
    %2401 = vmatpush1.bf16.msra.mxu0 0
    %2402 = vmatprep.subr.bf16.mxu0 0
    %2403 = vmatpush1.bf16.msra.mxu0 0
    %2404 = vmatprep.subr.bf16.mxu0 0
    %2405 = vmatpush1.bf16.msra.mxu0 0
    %2406 = vmatprep.subr.bf16.mxu0 0
    %2407 = vmatpush1.bf16.msra.mxu0 0
    %2408 = vmatprep.subr.bf16.mxu0 0
    %2409 = vmatpush1.bf16.msra.mxu0 0
    %2410 = vmatprep.subr.bf16.mxu0 0
    %2411 = vmatpush1.bf16.msra.mxu0 0
    %2412 = vmatprep.mubr.bf16.mxu0 0
    %2413 = vmatmul.mubr.bf16.gmra.mrb[0].mxu0 %v2140
    %v2414 = vpop.f32.mrb[0].mxu0
    %v2415 = vadd.f32 %v2375, %v2414
    %v2416 = vpop.f32.mrb[0].mxu0
    %v2417 = vpop.f32.mrb[0].mxu0
    %v2418 = vpop.f32.mrb[0].mxu0
    %2419 = vdwg.mxu0
    %v2420 = vld [vmem:[%s13] sm:$0x1]
    %v2421 = vld [vmem:[%s14] sm:$0x1]
    %v2422 = vrot.slane %v2415, 4
    %v2423 = vadd.f32 %v2415, %v2422
    %v2424 = vrot.slane %v2423, 2
    %v2425 = vadd.f32 %v2423, %v2424
    %v2426 = vrot.slane %v2425, 1
    %v2427 = vadd.f32 %v2425, %v2426
    %v2428 = vmul.f32 %v2415, %v2415
    %v2429 = vrot.slane %v2428, 4
    %v2430 = vadd.f32 %v2428, %v2429
    %v2431 = vrot.slane %v2430, 2
    %v2432 = vadd.f32 %v2430, %v2431
    %v2433 = vrot.slane %v2432, 1
    %v2434 = vadd.f32 %v2432, %v2433
    %v2435 = vmul.f32 %v2427, 0.125
    %v2436 = vmul.f32 %v2434, 0.125
    %v2437 = vmul.f32 %v2435, %v2435
    %v2438 = vsub.f32 %v2436, %v2437
    %v2439 = vmax.f32 %v2438, 0.0
    %v2440 = vadd.f32 %v2439, 1e-05
    %v2441 = vrsqrt.pop %v2440
    %v2442 = vmul.f32 %v2420, %v2441
    %v2443 = vmul.f32 %v2435, %v2442
    %v2444 = vsub.f32 %v2421, %v2443
    %v2446 = vlaneseq
    %v2447 = vshrl.u32 %v2446, 7
    %v2448 = vsub.s32 0, %v2447
    %v2449 = vrot.slane %v2442, %v2448
    %v2451 = vmul.f32 %v2415, %v2449
    %v2453 = vlaneseq
    %v2454 = vshrl.u32 %v2453, 7
    %v2455 = vsub.s32 0, %v2454
    %v2456 = vrot.slane %v2444, %v2455
    %v2458 = vadd.f32 %v2451, %v2456
    %v2459 = vmax.f32 %v2458, 0.0
    %v2460 = vld [vmem:[%s15] sm:$0x1]
    %v2462 = vlaneseq
    %v2463 = vshrl.u32 %v2462, 7
    %v2464 = vsub.s32 0, %v2463
    %v2465 = vrot.slane %v2460, %v2464
    %v2467 = vmul.f32 %v2459, %v2465
    %2468 = vadd.xlane.f32.xlu0 %v2467
    %v2469 = vpop.xlane.xlu0 %2468
    %v2470 = vld [vmem:[%s16] sm:$0x1]
    %v2472 = vlaneseq
    %v2473 = vshrl.u32 %v2472, 7
    %v2474 = vsub.s32 0, %v2473
    %v2475 = vrot.slane %v2470, %v2474
    %v2477 = vadd.f32 %v2469, %v2475
    %2478 = vst [vmem:[#allocation14] sm:$0xff] %v2477
    // Predicated region
    $region98: #{tpu_custom_call.1} parent=1 // pred_check
      _
    $region99: #{tpu_custom_call.1} parent=1 // pred_check_branch
      %2480 = sbr.rel (0) target = $region101
    $region100: #{tpu_custom_call.1} parent=1 // pred_region
      %s2482 = ssub.s32 128, 128
      %2483 = vsyncadd [#allocation4], %s2482
      %s2485 = sshll.u32 [#allocation14], 4
      %s2486 = int_to_ptr.vmem [resolvable:$true] %s2485
      %2488 = dma.vmem_to_hbm [thread:$0]  %s2486, 128, %s17, [#allocation4]
    $region101: #{tpu_custom_call.1} parent=1 // pred_fallthru
      _
    // Predicated region
    $region102: #{tpu_custom_call.1} parent=1 // pred_check
      _
    $region103: #{tpu_custom_call.1} parent=1 // pred_check_branch
      %2490 = sbr.rel (0) target = $region105
    $region104: #{tpu_custom_call.1} parent=1 // pred_region
      %2491 = dma.done [#allocation4], 128
    $region105: #{tpu_custom_call.1} parent=1 // pred_fallthru
      _
    %2492 = vsyncpa [#allocation3], 1
    %2493 = vsyncpa [#allocation6], 1
    %2494 = vsyncpa [#allocation9], 1
    %2495 = vsyncpa [#allocation12], 1
    %2496 = vsyncpa [#allocation4], 1

</llo_original>
